<compile_context>
chip_gen: v5e
topology: v5e:2x2
jax: 0.10.0
libtpu: 0.0.40
codegen_flags: <defaults>
</compile_context>

<pallas_src>
import functools

import jax
import jax.numpy as jnp
from jax.experimental import pallas as pl
from jax.experimental.pallas import tpu as pltpu

EPS = 1e-5
NEG_SLOPE = 0.2
LANE = 128            # every layer output is lane-padded to 128 -> unmasked vst
CONV1_TILE_M = 512    # rows per grid tile for the (BN-free) conv1 layer


def _lrelu(z):
    return jnp.where(z >= 0, z, NEG_SLOPE * z)


# ----------------------------------------------------------------------------
# Kernels (one pallas_call per conv layer, one for the whole tail)
# ----------------------------------------------------------------------------
def _conv_lrelu_kernel(taps_ref, w_ref, o_ref):
    """3x3 conv as ONE (M,9*Cin)x(9*Cin,128) bf16 MXU matmul + LeakyReLU."""
    acc = jnp.dot(taps_ref[...], w_ref[...], preferred_element_type=jnp.float32)
    o_ref[...] = _lrelu(acc).astype(o_ref.dtype)


def _conv_bn_lrelu_kernel(taps_ref, w_ref, g_ref, b_ref, o_ref):
    """3x3 conv (single matmul) + training-mode BatchNorm + LeakyReLU."""
    acc = jnp.dot(taps_ref[...], w_ref[...], preferred_element_type=jnp.float32)
    # Batch stats over all N*Ho*Wo rows while `acc` is still VMEM/vreg resident
    # (single pass, no re-read of the activation); centered, biased variance.
    mean = jnp.mean(acc, axis=0, keepdims=True)
    var = jnp.mean(jnp.square(acc - mean), axis=0, keepdims=True)
    z = (acc - mean) * jax.lax.rsqrt(var + EPS) * g_ref[...] + b_ref[...]
    o_ref[...] = _lrelu(z).astype(o_ref.dtype)


def _tail_kernel(x_ref, w8_ref, b8_ref, g5_ref, b5_ref, wo_ref, bo_ref, o_ref,
                 *, n_imgs, hw):
    # conv8 (1x1, + bias): bf16 operands -> MXU, f32 accumulation.
    y = jnp.dot(x_ref[...], w8_ref[...],
                preferred_element_type=jnp.float32) + b8_ref[...]
    # batchnorm5 (training-mode batch stats) + LeakyReLU, f32 math.
    mean = jnp.mean(y, axis=0, keepdims=True)
    var = jnp.mean(jnp.square(y - mean), axis=0, keepdims=True)
    z = _lrelu((y - mean) * jax.lax.rsqrt(var + EPS) * g5_ref[...] + b5_ref[...])
    # AdaptiveAvgPool2d(1): per-image mean over Ho*Wo rows, done as an MXU
    # matmul against a pooling matrix built in-kernel from iota (no HBM input,
    # no XLA eye/repeat between calls).
    m = n_imgs * hw
    rows = jax.lax.broadcasted_iota(jnp.int32, (n_imgs, m), 0)
    cols = jax.lax.broadcasted_iota(jnp.int32, (n_imgs, m), 1)
    seg = rows * hw
    pool = jnp.where((cols >= seg) & (cols < seg + hw),
                     jnp.float32(1.0 / hw), jnp.float32(0.0))
    pooled = jnp.dot(pool, z, preferred_element_type=jnp.float32)
    # out_conv (1x1, + bias) + sigmoid.
    logit = jnp.dot(pooled, wo_ref[...],
                    preferred_element_type=jnp.float32) + bo_ref[...]
    o_ref[...] = jax.nn.sigmoid(logit)


# ----------------------------------------------------------------------------
# Wrapper glue (im2col along K, lane-padded weights, layer calls)
# ----------------------------------------------------------------------------
def _im2col(x_nhwc, cin, stride):
    """(M, 9*Cin) bf16 tap slab (im2col along K) for a 3x3, pad=1 conv."""
    n, h, w, c = x_nhwc.shape
    ho = (h + 2 - 3) // stride + 1
    wo = (w + 2 - 3) // stride + 1
    xv = x_nhwc[..., :cin] if c != cin else x_nhwc   # drop padded lanes (zeros)
    xp = jnp.pad(xv.astype(jnp.bfloat16), ((0, 0), (1, 1), (1, 1), (0, 0)))
    cols = []
    for ky in range(3):
        for kx in range(3):
            s = xp[:, ky:ky + (ho - 1) * stride + 1:stride,
                      kx:kx + (wo - 1) * stride + 1:stride, :]
            cols.append(s.reshape(n * ho * wo, cin))
    # Column order (ky, kx, ci) matches the (3,3,Cin,Cout)->(9*Cin,Cout)
    # weight reshape in _weight_k.
    return jnp.concatenate(cols, axis=1), (n, ho, wo)


def _weight_k(w_hwio):
    """(9*Cin, 128) bf16 lane-padded weight; padded output lanes are zero."""
    kh, kw, cin, cout = w_hwio.shape
    wk = w_hwio.reshape(kh * kw * cin, cout)
    return jnp.pad(wk, ((0, 0), (0, LANE - cout))).astype(jnp.bfloat16)


def conv_lrelu(x_nhwc, w_hwio, stride):
    """Fused conv + LeakyReLU (no BN): grid-tiled over M, 'parallel' semantics."""
    cin, cout = w_hwio.shape[2], w_hwio.shape[3]
    taps, (n, ho, wo) = _im2col(x_nhwc, cin, stride)
    wk = _weight_k(w_hwio)
    m, k9 = taps.shape
    tm = min(CONV1_TILE_M, m)
    m_pad = pl.cdiv(m, tm) * tm
    if m_pad != m:                      # ragged tail: pad rows (zero rows are inert)
        taps = jnp.pad(taps, ((0, m_pad - m), (0, 0)))
    out = pl.pallas_call(
        _conv_lrelu_kernel,
        out_shape=jax.ShapeDtypeStruct((m_pad, LANE), jnp.bfloat16),
        grid=(m_pad // tm,),
        in_specs=[pl.BlockSpec((tm, k9), lambda i: (i, 0)),
                  pl.BlockSpec((k9, LANE), lambda i: (0, 0))],
        out_specs=pl.BlockSpec((tm, LANE), lambda i: (i, 0)),
        compiler_params=pltpu.CompilerParams(
            dimension_semantics=("parallel",)),
    )(taps, wk)
    if m_pad != m:
        out = out[:m]
    return out, (n, ho, wo, cout)


def conv_bn_lrelu(x_nhwc, w_hwio, gamma, beta, stride):
    """Fused conv + training-mode BatchNorm + LeakyReLU (single VMEM block).

    BN statistics are global over N*Ho*Wo, so the activation stays resident in
    one block.
    """
    # TODO(synk): M-tile with a two-pass sum/sumsq reduction for large M / v7x.
    cin, cout = w_hwio.shape[2], w_hwio.shape[3]
    taps, (n, ho, wo) = _im2col(x_nhwc, cin, stride)
    wk = _weight_k(w_hwio)
    g = jnp.pad(gamma, (0, LANE - cout))[None, :]   # padded lanes: gamma/beta=0
    b = jnp.pad(beta, (0, LANE - cout))[None, :]
    m = taps.shape[0]
    out = pl.pallas_call(
        _conv_bn_lrelu_kernel,
        out_shape=jax.ShapeDtypeStruct((m, LANE), jnp.bfloat16),
        in_specs=[pl.BlockSpec(memory_space=pltpu.MemorySpace.VMEM)] * 4,
        out_specs=pl.BlockSpec(memory_space=pltpu.MemorySpace.VMEM),
    )(taps, wk, g, b)
    return out, (n, ho, wo, cout)


# ----------------------------------------------------------------------------
# Parameters (deterministic synthetic init; HWIO conv weights)
# ----------------------------------------------------------------------------
def init_params(key, in_channels, oc):
    def nxt():
        nonlocal key
        key, sub = jax.random.split(key)
        return sub

    def conv_w(kh, kw, ci, co):
        return 0.05 * jax.random.normal(nxt(), (kh, kw, ci, co), jnp.float32)

    def bn(c):
        g = 1.0 + 0.1 * jax.random.normal(nxt(), (c,), jnp.float32)
        b = 0.1 * jax.random.normal(nxt(), (c,), jnp.float32)
        return g, b

    p = {}
    p["conv1"] = conv_w(3, 3, in_channels, oc)
    p["conv1_1"] = conv_w(3, 3, oc, oc)
    p["bn1_g"], p["bn1_b"] = bn(oc)
    p["conv2"] = conv_w(3, 3, oc, 2 * oc)
    p["conv3"] = conv_w(3, 3, 2 * oc, 2 * oc)
    p["bn2_g"], p["bn2_b"] = bn(2 * oc)
    p["conv4"] = conv_w(3, 3, 2 * oc, 4 * oc)
    p["conv5"] = conv_w(3, 3, 4 * oc, 4 * oc)
    p["bn3_g"], p["bn3_b"] = bn(4 * oc)
    p["conv6"] = conv_w(3, 3, 4 * oc, 8 * oc)
    p["conv7"] = conv_w(3, 3, 8 * oc, 8 * oc)
    p["bn4_g"], p["bn4_b"] = bn(8 * oc)
    p["conv8_w"] = 0.05 * jax.random.normal(nxt(), (8 * oc, 16 * oc), jnp.float32)
    p["conv8_b"] = 0.1 * jax.random.normal(nxt(), (16 * oc,), jnp.float32)
    p["bn5_g"], p["bn5_b"] = bn(16 * oc)
    p["out_w"] = 0.05 * jax.random.normal(nxt(), (16 * oc, 1), jnp.float32)
    p["out_b"] = 0.1 * jax.random.normal(nxt(), (1,), jnp.float32)
    return p


# ----------------------------------------------------------------------------
# Forward pass (mirrors Discriminator.forward)
# ----------------------------------------------------------------------------
def discriminator_forward(params, x_nchw):
    x = jnp.transpose(x_nchw, (0, 2, 3, 1)).astype(jnp.float32)  # NCHW -> NHWC

    # input_block first half: conv1 -> lrelu (grid-tiled, no BN, no bias)
    y, (n, ho, wo, c) = conv_lrelu(x, params["conv1"], 1)
    x = y.reshape(n, ho, wo, LANE)            # stays bf16, lane-padded

    # conv1_1(s2)->bn1->lrelu, then block: (conv->bn->lrelu) x 6
    # (bn modules shared pairwise, exactly as in the PyTorch Sequential).
    for conv_name, bn_name, stride in [
        ("conv1_1", "bn1", 2),
        ("conv2", "bn2", 1), ("conv3", "bn2", 2),
        ("conv4", "bn3", 1), ("conv5", "bn3", 2),
        ("conv6", "bn4", 1), ("conv7", "bn4", 2),
    ]:
        y, (n, ho, wo, c) = conv_bn_lrelu(
            x, params[conv_name], params[bn_name + "_g"],
            params[bn_name + "_b"], stride)
        x = y.reshape(n, ho, wo, LANE)

    # out_block fused into ONE pallas_call:
    # conv8(1x1,+bias) -> bn5 -> lrelu -> avgpool(1) -> out_conv(+bias) -> sigmoid
    c8 = params["conv8_w"].shape[1]
    w8 = jnp.pad(params["conv8_w"],
                 ((0, LANE - c), (0, LANE - c8))).astype(jnp.bfloat16)
    b8 = jnp.pad(params["conv8_b"], (0, LANE - c8))[None, :]
    g5 = jnp.pad(params["bn5_g"], (0, LANE - c8))[None, :]
    b5 = jnp.pad(params["bn5_b"], (0, LANE - c8))[None, :]
    w_out = jnp.pad(params["out_w"], ((0, LANE - c8), (0, 0)))
    b_out = params["out_b"][None, :]
    prob = pl.pallas_call(
        functools.partial(_tail_kernel, n_imgs=n, hw=ho * wo),
        out_shape=jax.ShapeDtypeStruct((n, 1), jnp.float32),
        in_specs=[pl.BlockSpec(memory_space=pltpu.MemorySpace.VMEM)] * 7,
        out_specs=pl.BlockSpec(memory_space=pltpu.MemorySpace.VMEM),
    )(y, w8, b8, g5, b5, w_out, b_out)
    return prob.reshape(n, 1, 1, 1)  # matches PyTorch NCHW output (N,1,1,1)


if __name__ == "__main__":
    key = jax.random.PRNGKey(0)
    k_param, k_x = jax.random.split(key)

    in_channels, out_channels = 4, 8
    batch, spatial = 2, 16

    params = init_params(k_param, in_channels, out_channels)
    x = jax.random.normal(k_x, (batch, in_channels, spatial, spatial), jnp.float32)

    fwd = jax.jit(discriminator_forward)
    out = jax.block_until_ready(fwd(params, x))

    assert out.shape == (batch, 1, 1, 1), out.shape
    assert bool(jnp.all(jnp.isfinite(out)))
    assert bool(jnp.all((out >= 0.0) & (out <= 1.0)))
    print("KERNEL_OK")
</pallas_src>

<mosaic_0001>
module attributes {stable_mosaic.version = 11 : i64} {
  func.func @_conv_lrelu_kernel(%arg0: i32, %arg1: memref<512x36xbf16, #tpu.memory_space<vmem>>, %arg2: memref<36x128xbf16, #tpu.memory_space<vmem>>, %arg3: memref<512x128xbf16, #tpu.memory_space<vmem>>) attributes {dimension_semantics = [#tpu.dimension_semantics<parallel>], iteration_bounds = array<i64: 1>, scalar_prefetch = 0 : i64, scratch_operands = 0 : i64, tpu.core_type = #tpu.core_type<tc>, window_params = [{transform_indices = @transform_0, window_bounds = array<i64: 512, 36>}, {pipeline_mode = #tpu.pipeline_mode<synchronous>, transform_indices = @transform_1, window_bounds = array<i64: 36, 128>}, {transform_indices = @transform_2, window_bounds = array<i64: 512, 128>}]} {
    %c0 = arith.constant 0 : index
    %c0_0 = arith.constant 0 : index
    %0 = vector.load %arg1[%c0, %c0_0] : memref<512x36xbf16, #tpu.memory_space<vmem>>, vector<512x36xbf16>
    %c0_1 = arith.constant 0 : index
    %c0_2 = arith.constant 0 : index
    %1 = vector.load %arg2[%c0_1, %c0_2] : memref<36x128xbf16, #tpu.memory_space<vmem>>, vector<36x128xbf16>
    %cst = arith.constant dense<0.000000e+00> : vector<512x128xf32>
    %2 = tpu.matmul %0, %1, %cst {dimension_numbers = #tpu.dot_dimension_numbers<[1], [0], [0], [1], [0, 0, 1, 1], [], []>} : vector<512x36xbf16>, vector<36x128xbf16>, vector<512x128xf32> -> vector<512x128xf32>
    %cst_3 = arith.constant 0.000000e+00 : f32
    %3 = vector.broadcast %cst_3 : f32 to vector<512x128xf32>
    %4 = arith.cmpf oge, %2, %3 : vector<512x128xf32>
    %cst_4 = arith.constant 2.000000e-01 : f32
    %5 = vector.broadcast %cst_4 : f32 to vector<512x128xf32>
    %6 = arith.mulf %5, %2 : vector<512x128xf32>
    %7 = arith.select %4, %2, %6 : vector<512x128xi1>, vector<512x128xf32>
    %8 = arith.truncf %7 : vector<512x128xf32> to vector<512x128xbf16>
    %c0_5 = arith.constant 0 : index
    %c0_6 = arith.constant 0 : index
    %9 = vector.load %arg3[%c0_5, %c0_6] : memref<512x128xbf16, #tpu.memory_space<vmem>>, vector<512x128xbf16>
    tpu.vector_store %arg3[%c0_5, %c0_6], %8 {strides = array<i32>} : memref<512x128xbf16, #tpu.memory_space<vmem>>, vector<512x128xbf16>,
    return
  }
  func.func @transform_0(%arg0: i32) -> (i32, i32) {
    %c0_i32 = arith.constant 0 : i32
    %c0_i32_0 = arith.constant 0 : i32
    return %arg0, %c0_i32 : i32, i32
  }
  func.func @transform_1(%arg0: i32) -> (i32, i32) {
    %c0_i32 = arith.constant 0 : i32
    %c0_i32_0 = arith.constant 0 : i32
    %c0_i32_1 = arith.constant 0 : i32
    return %c0_i32, %c0_i32_0 : i32, i32
  }
  func.func @transform_2(%arg0: i32) -> (i32, i32) {
    %c0_i32 = arith.constant 0 : i32
    %c0_i32_0 = arith.constant 0 : i32
    return %arg0, %c0_i32 : i32, i32
  }
}

module attributes {stable_mosaic.version = 11 : i64} {
  func.func @_conv_bn_lrelu_kernel(%arg0: memref<128x72xbf16, #tpu.memory_space<vmem>>, %arg1: memref<72x128xbf16, #tpu.memory_space<vmem>>, %arg2: memref<1x128xf32, #tpu.memory_space<vmem>>, %arg3: memref<1x128xf32, #tpu.memory_space<vmem>>, %arg4: memref<128x128xbf16, #tpu.memory_space<vmem>>) attributes {dimension_semantics = [], scalar_prefetch = 0 : i64, scratch_operands = 0 : i64, tpu.core_type = #tpu.core_type<tc>} {
    %c0 = arith.constant 0 : index
    %c0_0 = arith.constant 0 : index
    %0 = vector.load %arg0[%c0, %c0_0] : memref<128x72xbf16, #tpu.memory_space<vmem>>, vector<128x72xbf16>
    %c0_1 = arith.constant 0 : index
    %c0_2 = arith.constant 0 : index
    %1 = vector.load %arg1[%c0_1, %c0_2] : memref<72x128xbf16, #tpu.memory_space<vmem>>, vector<72x128xbf16>
    %cst = arith.constant dense<0.000000e+00> : vector<128x128xf32>
    %2 = tpu.matmul %0, %1, %cst {dimension_numbers = #tpu.dot_dimension_numbers<[1], [0], [0], [1], [0, 0, 1, 1], [], []>} : vector<128x72xbf16>, vector<72x128xbf16>, vector<128x128xf32> -> vector<128x128xf32>
    %cst_3 = arith.constant dense<0.000000e+00> : vector<128xf32>
    %3 = vector.multi_reduction <add>, %2, %cst_3 [0] : vector<128x128xf32> to vector<128xf32>
    %4 = vector.shape_cast %3 : vector<128xf32> to vector<1x128xf32>
    %cst_4 = arith.constant 1.280000e+02 : f32
    %5 = vector.broadcast %cst_4 : f32 to vector<1x128xf32>
    %6 = arith.divf %4, %5 : vector<1x128xf32>
    %7 = vector.broadcast %6 : vector<1x128xf32> to vector<128x128xf32>
    %8 = arith.subf %2, %7 : vector<128x128xf32>
    %9 = arith.mulf %8, %8 : vector<128x128xf32>
    %cst_5 = arith.constant dense<0.000000e+00> : vector<128xf32>
    %10 = vector.multi_reduction <add>, %9, %cst_5 [0] : vector<128x128xf32> to vector<128xf32>
    %11 = vector.shape_cast %10 : vector<128xf32> to vector<1x128xf32>
    %cst_6 = arith.constant 1.280000e+02 : f32
    %12 = vector.broadcast %cst_6 : f32 to vector<1x128xf32>
    %13 = arith.divf %11, %12 : vector<1x128xf32>
    %14 = vector.broadcast %6 : vector<1x128xf32> to vector<128x128xf32>
    %15 = arith.subf %2, %14 : vector<128x128xf32>
    %cst_7 = arith.constant 9.99999974E-6 : f32
    %16 = vector.broadcast %cst_7 : f32 to vector<1x128xf32>
    %17 = arith.addf %13, %16 : vector<1x128xf32>
    %18 = math.rsqrt %17 : vector<1x128xf32>
    %19 = vector.broadcast %18 : vector<1x128xf32> to vector<128x128xf32>
    %20 = arith.mulf %15, %19 : vector<128x128xf32>
    %c0_8 = arith.constant 0 : index
    %c0_9 = arith.constant 0 : index
    %21 = vector.load %arg2[%c0_8, %c0_9] : memref<1x128xf32, #tpu.memory_space<vmem>>, vector<1x128xf32>
    %22 = vector.broadcast %21 : vector<1x128xf32> to vector<128x128xf32>
    %23 = arith.mulf %20, %22 : vector<128x128xf32>
    %c0_10 = arith.constant 0 : index
    %c0_11 = arith.constant 0 : index
    %24 = vector.load %arg3[%c0_10, %c0_11] : memref<1x128xf32, #tpu.memory_space<vmem>>, vector<1x128xf32>
    %25 = vector.broadcast %24 : vector<1x128xf32> to vector<128x128xf32>
    %26 = arith.addf %23, %25 : vector<128x128xf32>
    %cst_12 = arith.constant 0.000000e+00 : f32
    %27 = vector.broadcast %cst_12 : f32 to vector<128x128xf32>
    %28 = arith.cmpf oge, %26, %27 : vector<128x128xf32>
    %cst_13 = arith.constant 2.000000e-01 : f32
    %29 = vector.broadcast %cst_13 : f32 to vector<128x128xf32>
    %30 = arith.mulf %29, %26 : vector<128x128xf32>
    %31 = arith.select %28, %26, %30 : vector<128x128xi1>, vector<128x128xf32>
    %32 = arith.truncf %31 : vector<128x128xf32> to vector<128x128xbf16>
    %c0_14 = arith.constant 0 : index
    %c0_15 = arith.constant 0 : index
    %33 = vector.load %arg4[%c0_14, %c0_15] : memref<128x128xbf16, #tpu.memory_space<vmem>>, vector<128x128xbf16>
    tpu.vector_store %arg4[%c0_14, %c0_15], %32 {strides = array<i32>} : memref<128x128xbf16, #tpu.memory_space<vmem>>, vector<128x128xbf16>,
    return
  }
}

module attributes {stable_mosaic.version = 11 : i64} {
  func.func @_conv_bn_lrelu_kernel(%arg0: memref<32x144xbf16, #tpu.memory_space<vmem>>, %arg1: memref<144x128xbf16, #tpu.memory_space<vmem>>, %arg2: memref<1x128xf32, #tpu.memory_space<vmem>>, %arg3: memref<1x128xf32, #tpu.memory_space<vmem>>, %arg4: memref<32x128xbf16, #tpu.memory_space<vmem>>) attributes {dimension_semantics = [], scalar_prefetch = 0 : i64, scratch_operands = 0 : i64, tpu.core_type = #tpu.core_type<tc>} {
    %c0 = arith.constant 0 : index
    %c0_0 = arith.constant 0 : index
    %0 = vector.load %arg0[%c0, %c0_0] : memref<32x144xbf16, #tpu.memory_space<vmem>>, vector<32x144xbf16>
    %c0_1 = arith.constant 0 : index
    %c0_2 = arith.constant 0 : index
    %1 = vector.load %arg1[%c0_1, %c0_2] : memref<144x128xbf16, #tpu.memory_space<vmem>>, vector<144x128xbf16>
    %cst = arith.constant dense<0.000000e+00> : vector<32x128xf32>
    %2 = tpu.matmul %0, %1, %cst {dimension_numbers = #tpu.dot_dimension_numbers<[1], [0], [0], [1], [0, 0, 1, 1], [], []>} : vector<32x144xbf16>, vector<144x128xbf16>, vector<32x128xf32> -> vector<32x128xf32>
    %cst_3 = arith.constant dense<0.000000e+00> : vector<128xf32>
    %3 = vector.multi_reduction <add>, %2, %cst_3 [0] : vector<32x128xf32> to vector<128xf32>
    %4 = vector.shape_cast %3 : vector<128xf32> to vector<1x128xf32>
    %cst_4 = arith.constant 3.200000e+01 : f32
    %5 = vector.broadcast %cst_4 : f32 to vector<1x128xf32>
    %6 = arith.divf %4, %5 : vector<1x128xf32>
    %7 = vector.broadcast %6 : vector<1x128xf32> to vector<32x128xf32>
    %8 = arith.subf %2, %7 : vector<32x128xf32>
    %9 = arith.mulf %8, %8 : vector<32x128xf32>
    %cst_5 = arith.constant dense<0.000000e+00> : vector<128xf32>
    %10 = vector.multi_reduction <add>, %9, %cst_5 [0] : vector<32x128xf32> to vector<128xf32>
    %11 = vector.shape_cast %10 : vector<128xf32> to vector<1x128xf32>
    %cst_6 = arith.constant 3.200000e+01 : f32
    %12 = vector.broadcast %cst_6 : f32 to vector<1x128xf32>
    %13 = arith.divf %11, %12 : vector<1x128xf32>
    %14 = vector.broadcast %6 : vector<1x128xf32> to vector<32x128xf32>
    %15 = arith.subf %2, %14 : vector<32x128xf32>
    %cst_7 = arith.constant 9.99999974E-6 : f32
    %16 = vector.broadcast %cst_7 : f32 to vector<1x128xf32>
    %17 = arith.addf %13, %16 : vector<1x128xf32>
    %18 = math.rsqrt %17 : vector<1x128xf32>
    %19 = vector.broadcast %18 : vector<1x128xf32> to vector<32x128xf32>
    %20 = arith.mulf %15, %19 : vector<32x128xf32>
    %c0_8 = arith.constant 0 : index
    %c0_9 = arith.constant 0 : index
    %21 = vector.load %arg2[%c0_8, %c0_9] : memref<1x128xf32, #tpu.memory_space<vmem>>, vector<1x128xf32>
    %22 = vector.broadcast %21 : vector<1x128xf32> to vector<32x128xf32>
    %23 = arith.mulf %20, %22 : vector<32x128xf32>
    %c0_10 = arith.constant 0 : index
    %c0_11 = arith.constant 0 : index
    %24 = vector.load %arg3[%c0_10, %c0_11] : memref<1x128xf32, #tpu.memory_space<vmem>>, vector<1x128xf32>
    %25 = vector.broadcast %24 : vector<1x128xf32> to vector<32x128xf32>
    %26 = arith.addf %23, %25 : vector<32x128xf32>
    %cst_12 = arith.constant 0.000000e+00 : f32
    %27 = vector.broadcast %cst_12 : f32 to vector<32x128xf32>
    %28 = arith.cmpf oge, %26, %27 : vector<32x128xf32>
    %cst_13 = arith.constant 2.000000e-01 : f32
    %29 = vector.broadcast %cst_13 : f32 to vector<32x128xf32>
    %30 = arith.mulf %29, %26 : vector<32x128xf32>
    %31 = arith.select %28, %26, %30 : vector<32x128xi1>, vector<32x128xf32>
    %32 = arith.truncf %31 : vector<32x128xf32> to vector<32x128xbf16>
    %c0_14 = arith.constant 0 : index
    %c0_15 = arith.constant 0 : index
    %33 = vector.load %arg4[%c0_14, %c0_15] : memref<32x128xbf16, #tpu.memory_space<vmem>>, vector<32x128xbf16>
    tpu.vector_store %arg4[%c0_14, %c0_15], %32 {strides = array<i32>} : memref<32x128xbf16, #tpu.memory_space<vmem>>, vector<32x128xbf16>,
    return
  }
}

module attributes {stable_mosaic.version = 11 : i64} {
  func.func @_conv_bn_lrelu_kernel(%arg0: memref<8x288xbf16, #tpu.memory_space<vmem>>, %arg1: memref<288x128xbf16, #tpu.memory_space<vmem>>, %arg2: memref<1x128xf32, #tpu.memory_space<vmem>>, %arg3: memref<1x128xf32, #tpu.memory_space<vmem>>, %arg4: memref<8x128xbf16, #tpu.memory_space<vmem>>) attributes {dimension_semantics = [], scalar_prefetch = 0 : i64, scratch_operands = 0 : i64, tpu.core_type = #tpu.core_type<tc>} {
    %c0 = arith.constant 0 : index
    %c0_0 = arith.constant 0 : index
    %0 = vector.load %arg0[%c0, %c0_0] : memref<8x288xbf16, #tpu.memory_space<vmem>>, vector<8x288xbf16>
    %c0_1 = arith.constant 0 : index
    %c0_2 = arith.constant 0 : index
    %1 = vector.load %arg1[%c0_1, %c0_2] : memref<288x128xbf16, #tpu.memory_space<vmem>>, vector<288x128xbf16>
    %cst = arith.constant dense<0.000000e+00> : vector<8x128xf32>
    %2 = tpu.matmul %0, %1, %cst {dimension_numbers = #tpu.dot_dimension_numbers<[1], [0], [0], [1], [0, 0, 1, 1], [], []>} : vector<8x288xbf16>, vector<288x128xbf16>, vector<8x128xf32> -> vector<8x128xf32>
    %cst_3 = arith.constant dense<0.000000e+00> : vector<128xf32>
    %3 = vector.multi_reduction <add>, %2, %cst_3 [0] : vector<8x128xf32> to vector<128xf32>
    %4 = vector.shape_cast %3 : vector<128xf32> to vector<1x128xf32>
    %cst_4 = arith.constant 8.000000e+00 : f32
    %5 = vector.broadcast %cst_4 : f32 to vector<1x128xf32>
    %6 = arith.divf %4, %5 : vector<1x128xf32>
    %7 = vector.broadcast %6 : vector<1x128xf32> to vector<8x128xf32>
    %8 = arith.subf %2, %7 : vector<8x128xf32>
    %9 = arith.mulf %8, %8 : vector<8x128xf32>
    %cst_5 = arith.constant dense<0.000000e+00> : vector<128xf32>
    %10 = vector.multi_reduction <add>, %9, %cst_5 [0] : vector<8x128xf32> to vector<128xf32>
    %11 = vector.shape_cast %10 : vector<128xf32> to vector<1x128xf32>
    %cst_6 = arith.constant 8.000000e+00 : f32
    %12 = vector.broadcast %cst_6 : f32 to vector<1x128xf32>
    %13 = arith.divf %11, %12 : vector<1x128xf32>
    %14 = vector.broadcast %6 : vector<1x128xf32> to vector<8x128xf32>
    %15 = arith.subf %2, %14 : vector<8x128xf32>
    %cst_7 = arith.constant 9.99999974E-6 : f32
    %16 = vector.broadcast %cst_7 : f32 to vector<1x128xf32>
    %17 = arith.addf %13, %16 : vector<1x128xf32>
    %18 = math.rsqrt %17 : vector<1x128xf32>
    %19 = vector.broadcast %18 : vector<1x128xf32> to vector<8x128xf32>
    %20 = arith.mulf %15, %19 : vector<8x128xf32>
    %c0_8 = arith.constant 0 : index
    %c0_9 = arith.constant 0 : index
    %21 = vector.load %arg2[%c0_8, %c0_9] : memref<1x128xf32, #tpu.memory_space<vmem>>, vector<1x128xf32>
    %22 = vector.broadcast %21 : vector<1x128xf32> to vector<8x128xf32>
    %23 = arith.mulf %20, %22 : vector<8x128xf32>
    %c0_10 = arith.constant 0 : index
    %c0_11 = arith.constant 0 : index
    %24 = vector.load %arg3[%c0_10, %c0_11] : memref<1x128xf32, #tpu.memory_space<vmem>>, vector<1x128xf32>
    %25 = vector.broadcast %24 : vector<1x128xf32> to vector<8x128xf32>
    %26 = arith.addf %23, %25 : vector<8x128xf32>
    %cst_12 = arith.constant 0.000000e+00 : f32
    %27 = vector.broadcast %cst_12 : f32 to vector<8x128xf32>
    %28 = arith.cmpf oge, %26, %27 : vector<8x128xf32>
    %cst_13 = arith.constant 2.000000e-01 : f32
    %29 = vector.broadcast %cst_13 : f32 to vector<8x128xf32>
    %30 = arith.mulf %29, %26 : vector<8x128xf32>
    %31 = arith.select %28, %26, %30 : vector<8x128xi1>, vector<8x128xf32>
    %32 = arith.truncf %31 : vector<8x128xf32> to vector<8x128xbf16>
    %c0_14 = arith.constant 0 : index
    %c0_15 = arith.constant 0 : index
    %33 = vector.load %arg4[%c0_14, %c0_15] : memref<8x128xbf16, #tpu.memory_space<vmem>>, vector<8x128xbf16>
    tpu.vector_store %arg4[%c0_14, %c0_15], %32 {strides = array<i32>} : memref<8x128xbf16, #tpu.memory_space<vmem>>, vector<8x128xbf16>,
    return
  }
}

module attributes {stable_mosaic.version = 11 : i64} {
  func.func @_tail_kernel(%arg0: memref<2x128xbf16, #tpu.memory_space<vmem>>, %arg1: memref<128x128xbf16, #tpu.memory_space<vmem>>, %arg2: memref<1x128xf32, #tpu.memory_space<vmem>>, %arg3: memref<1x128xf32, #tpu.memory_space<vmem>>, %arg4: memref<1x128xf32, #tpu.memory_space<vmem>>, %arg5: memref<128x1xf32, #tpu.memory_space<vmem>>, %arg6: memref<1x1xf32, #tpu.memory_space<vmem>>, %arg7: memref<2x1xf32, #tpu.memory_space<vmem>>) attributes {dimension_semantics = [], scalar_prefetch = 0 : i64, scratch_operands = 0 : i64, tpu.core_type = #tpu.core_type<tc>} {
    %c0 = arith.constant 0 : index
    %c0_0 = arith.constant 0 : index
    %0 = vector.load %arg0[%c0, %c0_0] : memref<2x128xbf16, #tpu.memory_space<vmem>>, vector<2x128xbf16>
    %c0_1 = arith.constant 0 : index
    %c0_2 = arith.constant 0 : index
    %1 = vector.load %arg1[%c0_1, %c0_2] : memref<128x128xbf16, #tpu.memory_space<vmem>>, vector<128x128xbf16>
    %cst = arith.constant dense<0.000000e+00> : vector<2x128xf32>
    %2 = tpu.matmul %0, %1, %cst {dimension_numbers = #tpu.dot_dimension_numbers<[1], [0], [0], [1], [0, 0, 1, 1], [], []>} : vector<2x128xbf16>, vector<128x128xbf16>, vector<2x128xf32> -> vector<2x128xf32>
    %c0_3 = arith.constant 0 : index
    %c0_4 = arith.constant 0 : index
    %3 = vector.load %arg2[%c0_3, %c0_4] : memref<1x128xf32, #tpu.memory_space<vmem>>, vector<1x128xf32>
    %4 = vector.broadcast %3 : vector<1x128xf32> to vector<2x128xf32>
    %5 = arith.addf %2, %4 : vector<2x128xf32>
    %cst_5 = arith.constant dense<0.000000e+00> : vector<128xf32>
    %6 = vector.multi_reduction <add>, %5, %cst_5 [0] : vector<2x128xf32> to vector<128xf32>
    %7 = vector.shape_cast %6 : vector<128xf32> to vector<1x128xf32>
    %cst_6 = arith.constant 2.000000e+00 : f32
    %8 = vector.broadcast %cst_6 : f32 to vector<1x128xf32>
    %9 = arith.divf %7, %8 : vector<1x128xf32>
    %10 = vector.broadcast %9 : vector<1x128xf32> to vector<2x128xf32>
    %11 = arith.subf %5, %10 : vector<2x128xf32>
    %12 = arith.mulf %11, %11 : vector<2x128xf32>
    %cst_7 = arith.constant dense<0.000000e+00> : vector<128xf32>
    %13 = vector.multi_reduction <add>, %12, %cst_7 [0] : vector<2x128xf32> to vector<128xf32>
    %14 = vector.shape_cast %13 : vector<128xf32> to vector<1x128xf32>
    %cst_8 = arith.constant 2.000000e+00 : f32
    %15 = vector.broadcast %cst_8 : f32 to vector<1x128xf32>
    %16 = arith.divf %14, %15 : vector<1x128xf32>
    %17 = vector.broadcast %9 : vector<1x128xf32> to vector<2x128xf32>
    %18 = arith.subf %5, %17 : vector<2x128xf32>
    %cst_9 = arith.constant 9.99999974E-6 : f32
    %19 = vector.broadcast %cst_9 : f32 to vector<1x128xf32>
    %20 = arith.addf %16, %19 : vector<1x128xf32>
    %21 = math.rsqrt %20 : vector<1x128xf32>
    %22 = vector.broadcast %21 : vector<1x128xf32> to vector<2x128xf32>
    %23 = arith.mulf %18, %22 : vector<2x128xf32>
    %c0_10 = arith.constant 0 : index
    %c0_11 = arith.constant 0 : index
    %24 = vector.load %arg3[%c0_10, %c0_11] : memref<1x128xf32, #tpu.memory_space<vmem>>, vector<1x128xf32>
    %25 = vector.broadcast %24 : vector<1x128xf32> to vector<2x128xf32>
    %26 = arith.mulf %23, %25 : vector<2x128xf32>
    %c0_12 = arith.constant 0 : index
    %c0_13 = arith.constant 0 : index
    %27 = vector.load %arg4[%c0_12, %c0_13] : memref<1x128xf32, #tpu.memory_space<vmem>>, vector<1x128xf32>
    %28 = vector.broadcast %27 : vector<1x128xf32> to vector<2x128xf32>
    %29 = arith.addf %26, %28 : vector<2x128xf32>
    %cst_14 = arith.constant 0.000000e+00 : f32
    %30 = vector.broadcast %cst_14 : f32 to vector<2x128xf32>
    %31 = arith.cmpf oge, %29, %30 : vector<2x128xf32>
    %cst_15 = arith.constant 2.000000e-01 : f32
    %32 = vector.broadcast %cst_15 : f32 to vector<2x128xf32>
    %33 = arith.mulf %32, %29 : vector<2x128xf32>
    %34 = arith.select %31, %29, %33 : vector<2x128xi1>, vector<2x128xf32>
    %35 = tpu.iota {dimensions = array<i32: 0>} : vector<2x2xi32>
    %36 = tpu.iota {dimensions = array<i32: 1>} : vector<2x2xi32>
    %c1_i32 = arith.constant 1 : i32
    %37 = vector.broadcast %c1_i32 : i32 to vector<2x2xi32>
    %38 = arith.muli %35, %37 : vector<2x2xi32>
    %39 = arith.cmpi sge, %36, %38 : vector<2x2xi32>
    %c1_i32_16 = arith.constant 1 : i32
    %40 = vector.broadcast %c1_i32_16 : i32 to vector<2x2xi32>
    %41 = arith.addi %38, %40 : vector<2x2xi32>
    %42 = arith.cmpi slt, %36, %41 : vector<2x2xi32>
    %43 = arith.andi %39, %42 : vector<2x2xi1>
    %cst_17 = arith.constant 1.000000e+00 : f32
    %cst_18 = arith.constant 0.000000e+00 : f32
    %44 = vector.broadcast %cst_17 : f32 to vector<2x2xf32>
    %45 = vector.broadcast %cst_18 : f32 to vector<2x2xf32>
    %46 = arith.select %43, %44, %45 : vector<2x2xi1>, vector<2x2xf32>
    %cst_19 = arith.constant dense<0.000000e+00> : vector<2x128xf32>
    %47 = tpu.matmul %46, %34, %cst_19 {dimension_numbers = #tpu.dot_dimension_numbers<[1], [0], [0], [1], [0, 0, 1, 1], [], []>} : vector<2x2xf32>, vector<2x128xf32>, vector<2x128xf32> -> vector<2x128xf32>
    %c0_20 = arith.constant 0 : index
    %c0_21 = arith.constant 0 : index
    %48 = vector.load %arg5[%c0_20, %c0_21] : memref<128x1xf32, #tpu.memory_space<vmem>>, vector<128x1xf32>
    %cst_22 = arith.constant dense<0.000000e+00> : vector<2x1xf32>
    %49 = tpu.matmul %47, %48, %cst_22 {dimension_numbers = #tpu.dot_dimension_numbers<[1], [0], [0], [1], [0, 0, 1, 1], [], []>} : vector<2x128xf32>, vector<128x1xf32>, vector<2x1xf32> -> vector<2x1xf32>
    %c0_23 = arith.constant 0 : index
    %c0_24 = arith.constant 0 : index
    %50 = vector.load %arg6[%c0_23, %c0_24] : memref<1x1xf32, #tpu.memory_space<vmem>>, vector<1x1xf32>
    %51 = vector.broadcast %50 : vector<1x1xf32> to vector<2x1xf32>
    %52 = arith.addf %49, %51 : vector<2x1xf32>
    %53 = arith.negf %52 : vector<2x1xf32>
    %54 = math.exp %53 : vector<2x1xf32>
    %cst_25 = arith.constant 1.000000e+00 : f32
    %55 = vector.broadcast %cst_25 : f32 to vector<2x1xf32>
    %56 = arith.addf %55, %54 : vector<2x1xf32>
    %57 = arith.divf %55, %56 : vector<2x1xf32>
    %c0_26 = arith.constant 0 : index
    %c0_27 = arith.constant 0 : index
    %58 = vector.load %arg7[%c0_26, %c0_27] : memref<2x1xf32, #tpu.memory_space<vmem>>, vector<2x1xf32>
    tpu.vector_store %arg7[%c0_26, %c0_27], %57 {strides = array<i32>} : memref<2x1xf32, #tpu.memory_space<vmem>>, vector<2x1xf32>,
    return
  }
}

module attributes {stable_mosaic.version = 11 : i64} {
  func.func @_conv_bn_lrelu_kernel(%arg0: memref<2x576xbf16, #tpu.memory_space<vmem>>, %arg1: memref<576x128xbf16, #tpu.memory_space<vmem>>, %arg2: memref<1x128xf32, #tpu.memory_space<vmem>>, %arg3: memref<1x128xf32, #tpu.memory_space<vmem>>, %arg4: memref<2x128xbf16, #tpu.memory_space<vmem>>) attributes {dimension_semantics = [], scalar_prefetch = 0 : i64, scratch_operands = 0 : i64, tpu.core_type = #tpu.core_type<tc>} {
    %c0 = arith.constant 0 : index
    %c0_0 = arith.constant 0 : index
    %0 = vector.load %arg0[%c0, %c0_0] : memref<2x576xbf16, #tpu.memory_space<vmem>>, vector<2x576xbf16>
    %c0_1 = arith.constant 0 : index
    %c0_2 = arith.constant 0 : index
    %1 = vector.load %arg1[%c0_1, %c0_2] : memref<576x128xbf16, #tpu.memory_space<vmem>>, vector<576x128xbf16>
    %cst = arith.constant dense<0.000000e+00> : vector<2x128xf32>
    %2 = tpu.matmul %0, %1, %cst {dimension_numbers = #tpu.dot_dimension_numbers<[1], [0], [0], [1], [0, 0, 1, 1], [], []>} : vector<2x576xbf16>, vector<576x128xbf16>, vector<2x128xf32> -> vector<2x128xf32>
    %cst_3 = arith.constant dense<0.000000e+00> : vector<128xf32>
    %3 = vector.multi_reduction <add>, %2, %cst_3 [0] : vector<2x128xf32> to vector<128xf32>
    %4 = vector.shape_cast %3 : vector<128xf32> to vector<1x128xf32>
    %cst_4 = arith.constant 2.000000e+00 : f32
    %5 = vector.broadcast %cst_4 : f32 to vector<1x128xf32>
    %6 = arith.divf %4, %5 : vector<1x128xf32>
    %7 = vector.broadcast %6 : vector<1x128xf32> to vector<2x128xf32>
    %8 = arith.subf %2, %7 : vector<2x128xf32>
    %9 = arith.mulf %8, %8 : vector<2x128xf32>
    %cst_5 = arith.constant dense<0.000000e+00> : vector<128xf32>
    %10 = vector.multi_reduction <add>, %9, %cst_5 [0] : vector<2x128xf32> to vector<128xf32>
    %11 = vector.shape_cast %10 : vector<128xf32> to vector<1x128xf32>
    %cst_6 = arith.constant 2.000000e+00 : f32
    %12 = vector.broadcast %cst_6 : f32 to vector<1x128xf32>
    %13 = arith.divf %11, %12 : vector<1x128xf32>
    %14 = vector.broadcast %6 : vector<1x128xf32> to vector<2x128xf32>
    %15 = arith.subf %2, %14 : vector<2x128xf32>
    %cst_7 = arith.constant 9.99999974E-6 : f32
    %16 = vector.broadcast %cst_7 : f32 to vector<1x128xf32>
    %17 = arith.addf %13, %16 : vector<1x128xf32>
    %18 = math.rsqrt %17 : vector<1x128xf32>
    %19 = vector.broadcast %18 : vector<1x128xf32> to vector<2x128xf32>
    %20 = arith.mulf %15, %19 : vector<2x128xf32>
    %c0_8 = arith.constant 0 : index
    %c0_9 = arith.constant 0 : index
    %21 = vector.load %arg2[%c0_8, %c0_9] : memref<1x128xf32, #tpu.memory_space<vmem>>, vector<1x128xf32>
    %22 = vector.broadcast %21 : vector<1x128xf32> to vector<2x128xf32>
    %23 = arith.mulf %20, %22 : vector<2x128xf32>
    %c0_10 = arith.constant 0 : index
    %c0_11 = arith.constant 0 : index
    %24 = vector.load %arg3[%c0_10, %c0_11] : memref<1x128xf32, #tpu.memory_space<vmem>>, vector<1x128xf32>
    %25 = vector.broadcast %24 : vector<1x128xf32> to vector<2x128xf32>
    %26 = arith.addf %23, %25 : vector<2x128xf32>
    %cst_12 = arith.constant 0.000000e+00 : f32
    %27 = vector.broadcast %cst_12 : f32 to vector<2x128xf32>
    %28 = arith.cmpf oge, %26, %27 : vector<2x128xf32>
    %cst_13 = arith.constant 2.000000e-01 : f32
    %29 = vector.broadcast %cst_13 : f32 to vector<2x128xf32>
    %30 = arith.mulf %29, %26 : vector<2x128xf32>
    %31 = arith.select %28, %26, %30 : vector<2x128xi1>, vector<2x128xf32>
    %32 = arith.truncf %31 : vector<2x128xf32> to vector<2x128xbf16>
    %c0_14 = arith.constant 0 : index
    %c0_15 = arith.constant 0 : index
    %33 = vector.load %arg4[%c0_14, %c0_15] : memref<2x128xbf16, #tpu.memory_space<vmem>>, vector<2x128xbf16>
    tpu.vector_store %arg4[%c0_14, %c0_15], %32 {strides = array<i32>} : memref<2x128xbf16, #tpu.memory_space<vmem>>, vector<2x128xbf16>,
    return
  }
}

</mosaic_0001>

<llo_original>
// kernel: discriminator_forward.10
$region0: #{discriminator_forward.10}
  #allocation0 [shape = 'u32[]', space=smem, size = 0x4, offset = 0x4, fixed_abs, tag = 'smem constant byte address 0x4 - core index']
  #allocation1 [shape = 'u32[72,128]{1,0:T(1,128)}', space=vmem, size = 0x9000, scoped, tag = 'internal scratch']
  %s0 = inlined_call_operand.vmem [shape: bf16[128,72], index: 0, kind: input, shape index: {}]
  %s1 = inlined_call_operand.vmem [shape: bf16[72,128], index: 1, kind: input, shape index: {}]
  %s2 = inlined_call_operand.vmem [shape: f32[1,128], index: 2, kind: input, shape index: {}]
  %s3 = inlined_call_operand.vmem [shape: f32[1,128], index: 3, kind: input, shape index: {}]
  %s4 = inlined_call_operand.vmem [shape: bf16[128,128], index: 4, kind: output, shape index: {}]
  %s5 = sld [smem:[#allocation0]]
  $region26: #{discriminator_forward.10} parent=0
    _
  %s7 = ssub.s32 1, %s5
  %s8 = scalar_select 0, %s7, %s5
  // Predicated region
  $region2: #{discriminator_forward.10} parent=0 // pred_check
    _
  $region3: #{discriminator_forward.10} parent=0 // pred_check_branch
    %10 = sbr.rel (0) target = $region5
  $region4: #{discriminator_forward.10} parent=0 // pred_region
    _
  $region5: #{discriminator_forward.10} parent=0 // pred_fallthru
    _
  // Predicated region
  $region6: #{discriminator_forward.10} parent=0 // pred_check
    _
  $region7: #{discriminator_forward.10} parent=0 // pred_check_branch
    %12 = sbr.rel (0) target = $region9
  $region8: #{discriminator_forward.10} parent=0 // pred_region
    _
  $region9: #{discriminator_forward.10} parent=0 // pred_fallthru
    _
  // Predicated region
  $region10: #{discriminator_forward.10} parent=0 // pred_check
    _
  $region11: #{discriminator_forward.10} parent=0 // pred_check_branch
    %14 = sbr.rel (0) target = $region13
  $region12: #{discriminator_forward.10} parent=0 // pred_region
    _
  $region13: #{discriminator_forward.10} parent=0 // pred_fallthru
    _
  // Predicated region
  $region14: #{discriminator_forward.10} parent=0 // pred_check
    _
  $region15: #{discriminator_forward.10} parent=0 // pred_check_branch
    %16 = sbr.rel (0) target = $region17
  $region16: #{discriminator_forward.10} parent=0 // pred_region
    _
  $region17: #{discriminator_forward.10} parent=0 // pred_fallthru
    _
  %v18 = vld [vmem:[%s0] sm:$0xf]
  %v19 = vld [vmem:[%s0 + $0x4] sm:$0xf]
  %v20 = vld [vmem:[%s0 + $0x8] sm:$0xf]
  %v21 = vld [vmem:[%s0 + $0xc] sm:$0xf]
  %v22 = vld [vmem:[%s0 + $0x10] sm:$0xf]
  %v23 = vld [vmem:[%s0 + $0x14] sm:$0xf]
  %v24 = vld [vmem:[%s0 + $0x18] sm:$0xf]
  %v25 = vld [vmem:[%s0 + $0x1c] sm:$0xf]
  %v26 = vld [vmem:[%s0 + $0x20] sm:$0xf]
  %v27 = vld [vmem:[%s0 + $0x24] sm:$0xf]
  %v28 = vld [vmem:[%s0 + $0x28] sm:$0xf]
  %v29 = vld [vmem:[%s0 + $0x2c] sm:$0xf]
  %v30 = vld [vmem:[%s0 + $0x30] sm:$0xf]
  %v31 = vld [vmem:[%s0 + $0x34] sm:$0xf]
  %v32 = vld [vmem:[%s0 + $0x38] sm:$0xf]
  %v33 = vld [vmem:[%s0 + $0x3c] sm:$0xf]
  %v34 = vld [vmem:[%s1] sm:$0xf]
  %v35 = vld [vmem:[%s1 + $0x4] sm:$0xf]
  %v36 = vld [vmem:[%s1 + $0x8] sm:$0xf]
  %v37 = vld [vmem:[%s1 + $0xc] sm:$0xf]
  %v38 = vld [vmem:[%s1 + $0x10] sm:$0xf]
  %v39 = vld [vmem:[%s1 + $0x14] sm:$0xf]
  %v40 = vld [vmem:[%s1 + $0x18] sm:$0xf]
  %v41 = vld [vmem:[%s1 + $0x1c] sm:$0xf]
  %v42 = vld [vmem:[%s1 + $0x20] sm:$0xf]
  %v59 = vunpack.c.l.b16 %v18
  %v60 = vunpack.c.l.b16 %v19
  %v61 = vunpack.c.l.b16 %v20
  %v62 = vunpack.c.l.b16 %v21
  %v63 = vunpack.c.l.b16 %v22
  %v64 = vunpack.c.l.b16 %v23
  %v65 = vunpack.c.l.b16 %v24
  %v66 = vunpack.c.l.b16 %v25
  %v67 = vunpack.c.l.b16 %v26
  %v68 = vunpack.c.l.b16 %v27
  %v69 = vunpack.c.l.b16 %v28
  %v70 = vunpack.c.l.b16 %v29
  %v71 = vunpack.c.l.b16 %v30
  %v72 = vunpack.c.l.b16 %v31
  %v73 = vunpack.c.l.b16 %v32
  %v74 = vunpack.c.l.b16 %v33
  %v75 = vpack.c.b16 %v60, %v59
  %v76 = vpack.c.b16 %v62, %v61
  %v77 = vpack.c.b16 %v64, %v63
  %v78 = vpack.c.b16 %v66, %v65
  %v79 = vpack.c.b16 %v68, %v67
  %v80 = vpack.c.b16 %v70, %v69
  %v81 = vpack.c.b16 %v72, %v71
  %v82 = vpack.c.b16 %v74, %v73
  %v92 = vunpack.c.l.b16 %v34
  %v93 = vunpack.c.l.b16 %v35
  %v94 = vunpack.c.l.b16 %v36
  %v95 = vunpack.c.l.b16 %v37
  %v96 = vunpack.c.l.b16 %v38
  %v97 = vunpack.c.l.b16 %v39
  %v98 = vunpack.c.l.b16 %v40
  %v99 = vunpack.c.l.b16 %v41
  %v100 = vunpack.c.l.b16 %v42
  %v101 = vpack.c.b16 %v93, %v92
  %v102 = vpack.c.b16 %v95, %v94
  %v103 = vpack.c.b16 %v97, %v96
  %v104 = vpack.c.b16 %v99, %v98
  %v105 = vpack.c.b16 %v100, %v100
  %vm110 = vcmask 588800
  %v112 = vsel %vm110, %v75, 0
  %v115 = vsel %vm110, %v76, 0
  %v118 = vsel %vm110, %v77, 0
  %v121 = vsel %vm110, %v78, 0
  %v124 = vsel %vm110, %v79, 0
  %v127 = vsel %vm110, %v80, 0
  %v130 = vsel %vm110, %v81, 0
  %v133 = vsel %vm110, %v82, 0
  %vm135 = vcmask 1043456
  %v137 = vsel %vm135, %v105, 0
  %139 = vmatpush.bf16.msra.mxu0 0
  %140 = vmatpush.bf16.msra.mxu0 0
  %141 = vmatpush.bf16.msra.mxu0 0
  %142 = vmatpush.bf16.msra.mxu0 %v137
  %143 = vmatpush.bf16.msra.mxu0 %v104
  %144 = vmatpush.bf16.msra.mxu0 %v103
  %145 = vmatpush.bf16.msra.mxu0 %v102
  %146 = vmatpush.bf16.msra.mxu0 %v101
  %147 = vmatmul.bf16.gmra.mxu0 %v112
  %v148 = vpop.f32.mrf.mxu0
  %v149 = vadd.f32 0.0, %v148
  %v150 = vpop.f32.mrf.mxu0
  %v151 = vadd.f32 0.0, %v150
  %152 = vmatmul.bf16.gmra.mxu0 %v115
  %v153 = vpop.f32.mrf.mxu0
  %v154 = vadd.f32 0.0, %v153
  %v155 = vpop.f32.mrf.mxu0
  %v156 = vadd.f32 0.0, %v155
  %157 = vmatmul.bf16.gmra.mxu0 %v118
  %v158 = vpop.f32.mrf.mxu0
  %v159 = vadd.f32 0.0, %v158
  %v160 = vpop.f32.mrf.mxu0
  %v161 = vadd.f32 0.0, %v160
  %162 = vmatmul.bf16.gmra.mxu0 %v121
  %v163 = vpop.f32.mrf.mxu0
  %v164 = vadd.f32 0.0, %v163
  %v165 = vpop.f32.mrf.mxu0
  %v166 = vadd.f32 0.0, %v165
  %167 = vmatmul.bf16.gmra.mxu0 %v124
  %v168 = vpop.f32.mrf.mxu0
  %v169 = vadd.f32 0.0, %v168
  %v170 = vpop.f32.mrf.mxu0
  %v171 = vadd.f32 0.0, %v170
  %172 = vmatmul.bf16.gmra.mxu0 %v127
  %v173 = vpop.f32.mrf.mxu0
  %v174 = vadd.f32 0.0, %v173
  %v175 = vpop.f32.mrf.mxu0
  %v176 = vadd.f32 0.0, %v175
  %177 = vmatmul.bf16.gmra.mxu0 %v130
  %v178 = vpop.f32.mrf.mxu0
  %v179 = vadd.f32 0.0, %v178
  %v180 = vpop.f32.mrf.mxu0
  %v181 = vadd.f32 0.0, %v180
  %182 = vmatmul.bf16.gmra.mxu0 %v133
  %v183 = vpop.f32.mrf.mxu0
  %v184 = vadd.f32 0.0, %v183
  %v185 = vpop.f32.mrf.mxu0
  %v186 = vadd.f32 0.0, %v185
  %187 = vdwg.mxu0
  %v188 = vadd.f32 %v149, %v151
  %v189 = vadd.f32 %v188, %v154
  %v190 = vadd.f32 %v189, %v156
  %v191 = vadd.f32 %v190, %v159
  %v192 = vadd.f32 %v191, %v161
  %v193 = vadd.f32 %v192, %v164
  %v194 = vadd.f32 %v193, %v166
  %v195 = vadd.f32 %v194, %v169
  %v196 = vadd.f32 %v195, %v171
  %v197 = vadd.f32 %v196, %v174
  %v198 = vadd.f32 %v197, %v176
  %v199 = vadd.f32 %v198, %v179
  %v200 = vadd.f32 %v199, %v181
  %v201 = vadd.f32 %v200, %v184
  %v202 = vadd.f32 %v201, %v186
  %v203 = vrot.slane %v202, 4
  %v204 = vadd.f32 %v202, %v203
  %v205 = vrot.slane %v204, 2
  %v206 = vadd.f32 %v204, %v205
  %v207 = vrot.slane %v206, 1
  %v208 = vadd.f32 %v206, %v207
  %v209 = vrcp.pop 128.0
  %v210 = vmul.f32 128.0, %v209
  %v211 = vsub.f32 1.0, %v210
  %v212 = vmul.f32 %v209, %v211
  %v213 = vadd.f32 %v209, %v212
  %vm214 = vweird.f32 %v209
  %v215 = vsel %vm214, %v209, %v213
  %v216 = vmul.f32 %v208, %v215
  %v217 = vsub.f32 %v149, %v216
  %v218 = vsub.f32 %v151, %v216
  %v219 = vsub.f32 %v154, %v216
  %v220 = vsub.f32 %v156, %v216
  %v221 = vsub.f32 %v159, %v216
  %v222 = vsub.f32 %v161, %v216
  %v223 = vsub.f32 %v164, %v216
  %v224 = vsub.f32 %v166, %v216
  %v225 = vsub.f32 %v169, %v216
  %v226 = vsub.f32 %v171, %v216
  %v227 = vsub.f32 %v174, %v216
  %v228 = vsub.f32 %v176, %v216
  %v229 = vsub.f32 %v179, %v216
  %v230 = vsub.f32 %v181, %v216
  %v231 = vsub.f32 %v184, %v216
  %v232 = vsub.f32 %v186, %v216
  %v233 = vmul.f32 %v217, %v217
  %v234 = vmul.f32 %v218, %v218
  %v235 = vmul.f32 %v219, %v219
  %v236 = vmul.f32 %v220, %v220
  %v237 = vmul.f32 %v221, %v221
  %v238 = vmul.f32 %v222, %v222
  %v239 = vmul.f32 %v223, %v223
  %v240 = vmul.f32 %v224, %v224
  %v241 = vmul.f32 %v225, %v225
  %v242 = vmul.f32 %v226, %v226
  %v243 = vmul.f32 %v227, %v227
  %v244 = vmul.f32 %v228, %v228
  %v245 = vmul.f32 %v229, %v229
  %v246 = vmul.f32 %v230, %v230
  %v247 = vmul.f32 %v231, %v231
  %v248 = vmul.f32 %v232, %v232
  %v249 = vadd.f32 %v233, %v234
  %v250 = vadd.f32 %v249, %v235
  %v251 = vadd.f32 %v250, %v236
  %v252 = vadd.f32 %v251, %v237
  %v253 = vadd.f32 %v252, %v238
  %v254 = vadd.f32 %v253, %v239
  %v255 = vadd.f32 %v254, %v240
  %v256 = vadd.f32 %v255, %v241
  %v257 = vadd.f32 %v256, %v242
  %v258 = vadd.f32 %v257, %v243
  %v259 = vadd.f32 %v258, %v244
  %v260 = vadd.f32 %v259, %v245
  %v261 = vadd.f32 %v260, %v246
  %v262 = vadd.f32 %v261, %v247
  %v263 = vadd.f32 %v262, %v248
  %v264 = vrot.slane %v263, 4
  %v265 = vadd.f32 %v263, %v264
  %v266 = vrot.slane %v265, 2
  %v267 = vadd.f32 %v265, %v266
  %v268 = vrot.slane %v267, 1
  %v269 = vadd.f32 %v267, %v268
  %v270 = vmul.f32 %v269, %v215
  %v271 = vadd.f32 %v270, 1e-05
  %v272 = vrsqrt.pop %v271
  %v273 = vmul.f32 %v272, %v271
  %v274 = vmul.f32 %v273, %v272
  %v275 = vmul.f32 0.5, %v274
  %v276 = vsub.f32 1.5, %v275
  %v277 = vmul.f32 %v272, %v276
  %vm278 = vweird.f32 %v271
  %vm279 = vweird.f32 %v272
  %vm280 = vmor %vm278, %vm279
  %v281 = vsel %vm280, %v272, %v277
  %v282 = vmul.f32 %v217, %v281
  %v283 = vmul.f32 %v218, %v281
  %v284 = vmul.f32 %v219, %v281
  %v285 = vmul.f32 %v220, %v281
  %v286 = vmul.f32 %v221, %v281
  %v287 = vmul.f32 %v222, %v281
  %v288 = vmul.f32 %v223, %v281
  %v289 = vmul.f32 %v224, %v281
  %v290 = vmul.f32 %v225, %v281
  %v291 = vmul.f32 %v226, %v281
  %v292 = vmul.f32 %v227, %v281
  %v293 = vmul.f32 %v228, %v281
  %v294 = vmul.f32 %v229, %v281
  %v295 = vmul.f32 %v230, %v281
  %v296 = vmul.f32 %v231, %v281
  %v297 = vmul.f32 %v232, %v281
  %v298 = vld [vmem:[%s2] sm:$0x1]
  %v300 = vperm.slane %v298, 0
  %v302 = vmul.f32 %v282, %v300
  %v303 = vmul.f32 %v283, %v300
  %v304 = vmul.f32 %v284, %v300
  %v305 = vmul.f32 %v285, %v300
  %v306 = vmul.f32 %v286, %v300
  %v307 = vmul.f32 %v287, %v300
  %v308 = vmul.f32 %v288, %v300
  %v309 = vmul.f32 %v289, %v300
  %v310 = vmul.f32 %v290, %v300
  %v311 = vmul.f32 %v291, %v300
  %v312 = vmul.f32 %v292, %v300
  %v313 = vmul.f32 %v293, %v300
  %v314 = vmul.f32 %v294, %v300
  %v315 = vmul.f32 %v295, %v300
  %v316 = vmul.f32 %v296, %v300
  %v317 = vmul.f32 %v297, %v300
  %v318 = vld [vmem:[%s3] sm:$0x1]
  %v320 = vperm.slane %v318, 0
  %v322 = vadd.f32 %v302, %v320
  %v323 = vadd.f32 %v303, %v320
  %v324 = vadd.f32 %v304, %v320
  %v325 = vadd.f32 %v305, %v320
  %v326 = vadd.f32 %v306, %v320
  %v327 = vadd.f32 %v307, %v320
  %v328 = vadd.f32 %v308, %v320
  %v329 = vadd.f32 %v309, %v320
  %v330 = vadd.f32 %v310, %v320
  %v331 = vadd.f32 %v311, %v320
  %v332 = vadd.f32 %v312, %v320
  %v333 = vadd.f32 %v313, %v320
  %v334 = vadd.f32 %v314, %v320
  %v335 = vadd.f32 %v315, %v320
  %v336 = vadd.f32 %v316, %v320
  %v337 = vadd.f32 %v317, %v320
  %vm338 = vcmp.ge.f32.partialorder %v322, 0.0
  %vm339 = vcmp.ge.f32.partialorder %v323, 0.0
  %vm340 = vcmp.ge.f32.partialorder %v324, 0.0
  %vm341 = vcmp.ge.f32.partialorder %v325, 0.0
  %vm342 = vcmp.ge.f32.partialorder %v326, 0.0
  %vm343 = vcmp.ge.f32.partialorder %v327, 0.0
  %vm344 = vcmp.ge.f32.partialorder %v328, 0.0
  %vm345 = vcmp.ge.f32.partialorder %v329, 0.0
  %vm346 = vcmp.ge.f32.partialorder %v330, 0.0
  %vm347 = vcmp.ge.f32.partialorder %v331, 0.0
  %vm348 = vcmp.ge.f32.partialorder %v332, 0.0
  %vm349 = vcmp.ge.f32.partialorder %v333, 0.0
  %vm350 = vcmp.ge.f32.partialorder %v334, 0.0
  %vm351 = vcmp.ge.f32.partialorder %v335, 0.0
  %vm352 = vcmp.ge.f32.partialorder %v336, 0.0
  %vm353 = vcmp.ge.f32.partialorder %v337, 0.0
  %v354 = vmul.f32 %v322, 0.2
  %v355 = vmul.f32 %v323, 0.2
  %v356 = vmul.f32 %v324, 0.2
  %v357 = vmul.f32 %v325, 0.2
  %v358 = vmul.f32 %v326, 0.2
  %v359 = vmul.f32 %v327, 0.2
  %v360 = vmul.f32 %v328, 0.2
  %v361 = vmul.f32 %v329, 0.2
  %v362 = vmul.f32 %v330, 0.2
  %v363 = vmul.f32 %v331, 0.2
  %v364 = vmul.f32 %v332, 0.2
  %v365 = vmul.f32 %v333, 0.2
  %v366 = vmul.f32 %v334, 0.2
  %v367 = vmul.f32 %v335, 0.2
  %v368 = vmul.f32 %v336, 0.2
  %v369 = vmul.f32 %v337, 0.2
  %v370 = vsel %vm338, %v322, %v354
  %v371 = vsel %vm339, %v323, %v355
  %v372 = vsel %vm340, %v324, %v356
  %v373 = vsel %vm341, %v325, %v357
  %v374 = vsel %vm342, %v326, %v358
  %v375 = vsel %vm343, %v327, %v359
  %v376 = vsel %vm344, %v328, %v360
  %v377 = vsel %vm345, %v329, %v361
  %v378 = vsel %vm346, %v330, %v362
  %v379 = vsel %vm347, %v331, %v363
  %v380 = vsel %vm348, %v332, %v364
  %v381 = vsel %vm349, %v333, %v365
  %v382 = vsel %vm350, %v334, %v366
  %v383 = vsel %vm351, %v335, %v367
  %v384 = vsel %vm352, %v336, %v368
  %v385 = vsel %vm353, %v337, %v369
  %v386 = vpack.c.bf16 %v370, %v370
  %v387 = vpack.c.bf16 %v371, %v371
  %v388 = vpack.c.bf16 %v372, %v372
  %v389 = vpack.c.bf16 %v373, %v373
  %v390 = vpack.c.bf16 %v374, %v374
  %v391 = vpack.c.bf16 %v375, %v375
  %v392 = vpack.c.bf16 %v376, %v376
  %v393 = vpack.c.bf16 %v377, %v377
  %v394 = vpack.c.bf16 %v378, %v378
  %v395 = vpack.c.bf16 %v379, %v379
  %v396 = vpack.c.bf16 %v380, %v380
  %v397 = vpack.c.bf16 %v381, %v381
  %v398 = vpack.c.bf16 %v382, %v382
  %v399 = vpack.c.bf16 %v383, %v383
  %v400 = vpack.c.bf16 %v384, %v384
  %v401 = vpack.c.bf16 %v385, %v385
  %402 = vst [vmem:[%s4] sm:$0xf] %v386
  %403 = vst [vmem:[%s4 + $0x4] sm:$0xf] %v387
  %404 = vst [vmem:[%s4 + $0x8] sm:$0xf] %v388
  %405 = vst [vmem:[%s4 + $0xc] sm:$0xf] %v389
  %406 = vst [vmem:[%s4 + $0x10] sm:$0xf] %v390
  %407 = vst [vmem:[%s4 + $0x14] sm:$0xf] %v391
  %408 = vst [vmem:[%s4 + $0x18] sm:$0xf] %v392
  %409 = vst [vmem:[%s4 + $0x1c] sm:$0xf] %v393
  %410 = vst [vmem:[%s4 + $0x20] sm:$0xf] %v394
  %411 = vst [vmem:[%s4 + $0x24] sm:$0xf] %v395
  %412 = vst [vmem:[%s4 + $0x28] sm:$0xf] %v396
  %413 = vst [vmem:[%s4 + $0x2c] sm:$0xf] %v397
  %414 = vst [vmem:[%s4 + $0x30] sm:$0xf] %v398
  %415 = vst [vmem:[%s4 + $0x34] sm:$0xf] %v399
  %416 = vst [vmem:[%s4 + $0x38] sm:$0xf] %v400
  %417 = vst [vmem:[%s4 + $0x3c] sm:$0xf] %v401
  // Predicated region
  $region18: #{discriminator_forward.10} parent=0 // pred_check
    _
  $region19: #{discriminator_forward.10} parent=0 // pred_check_branch
    %419 = sbr.rel (0) target = $region21
  $region20: #{discriminator_forward.10} parent=0 // pred_region
    _
  $region21: #{discriminator_forward.10} parent=0 // pred_fallthru
    _
  // Predicated region
  $region22: #{discriminator_forward.10} parent=0 // pred_check
    _
  $region23: #{discriminator_forward.10} parent=0 // pred_check_branch
    %421 = sbr.rel (0) target = $region25
  $region24: #{discriminator_forward.10} parent=0 // pred_region
    _
  $region25: #{discriminator_forward.10} parent=0 // pred_fallthru
    _

// kernel: discriminator_forward.9
$region0: #{discriminator_forward.9}
  #allocation0 [shape = 'u32[]', space=smem, size = 0x4, offset = 0x4, fixed_abs, tag = 'smem constant byte address 0x4 - core index']
  #allocation1 [shape = 'u32[72,128]{1,0:T(1,128)}', space=vmem, size = 0x9000, scoped, tag = 'internal scratch']
  %s0 = inlined_call_operand.vmem [shape: bf16[512,36], index: 0, kind: input, shape index: {}]
  %s1 = inlined_call_operand.vmem [shape: bf16[36,128], index: 1, kind: input, shape index: {}]
  %s2 = inlined_call_operand.vmem [shape: bf16[512,128], index: 2, kind: output, shape index: {}]
  %s3 = sld [smem:[#allocation0]]
  $region18: #{discriminator_forward.9} parent=0
    _
  %s5 = ssub.s32 1, %s3
  %s6 = scalar_select 0, %s5, %s3
  // Predicated region
  $region2: #{discriminator_forward.9} parent=0 // pred_check
    _
  $region3: #{discriminator_forward.9} parent=0 // pred_check_branch
    %8 = sbr.rel (0) target = $region5
  $region4: #{discriminator_forward.9} parent=0 // pred_region
    _
  $region5: #{discriminator_forward.9} parent=0 // pred_fallthru
    _
  // Predicated region
  $region6: #{discriminator_forward.9} parent=0 // pred_check
    _
  $region7: #{discriminator_forward.9} parent=0 // pred_check_branch
    %10 = sbr.rel (0) target = $region9
  $region8: #{discriminator_forward.9} parent=0 // pred_region
    _
  $region9: #{discriminator_forward.9} parent=0 // pred_fallthru
    _
  %v12 = vld [vmem:[%s0] sm:$0xf]
  %v13 = vld [vmem:[%s0 + $0x4] sm:$0xf]
  %v14 = vld [vmem:[%s0 + $0x8] sm:$0xf]
  %v15 = vld [vmem:[%s0 + $0xc] sm:$0xf]
  %v16 = vld [vmem:[%s0 + $0x10] sm:$0xf]
  %v17 = vld [vmem:[%s0 + $0x14] sm:$0xf]
  %v18 = vld [vmem:[%s0 + $0x18] sm:$0xf]
  %v19 = vld [vmem:[%s0 + $0x1c] sm:$0xf]
  %v20 = vld [vmem:[%s0 + $0x20] sm:$0xf]
  %v21 = vld [vmem:[%s0 + $0x24] sm:$0xf]
  %v22 = vld [vmem:[%s0 + $0x28] sm:$0xf]
  %v23 = vld [vmem:[%s0 + $0x2c] sm:$0xf]
  %v24 = vld [vmem:[%s0 + $0x30] sm:$0xf]
  %v25 = vld [vmem:[%s0 + $0x34] sm:$0xf]
  %v26 = vld [vmem:[%s0 + $0x38] sm:$0xf]
  %v27 = vld [vmem:[%s0 + $0x3c] sm:$0xf]
  %v28 = vld [vmem:[%s0 + $0x40] sm:$0xf]
  %v29 = vld [vmem:[%s0 + $0x44] sm:$0xf]
  %v30 = vld [vmem:[%s0 + $0x48] sm:$0xf]
  %v31 = vld [vmem:[%s0 + $0x4c] sm:$0xf]
  %v32 = vld [vmem:[%s0 + $0x50] sm:$0xf]
  %v33 = vld [vmem:[%s0 + $0x54] sm:$0xf]
  %v34 = vld [vmem:[%s0 + $0x58] sm:$0xf]
  %v35 = vld [vmem:[%s0 + $0x5c] sm:$0xf]
  %v36 = vld [vmem:[%s0 + $0x60] sm:$0xf]
  %v37 = vld [vmem:[%s0 + $0x64] sm:$0xf]
  %v38 = vld [vmem:[%s0 + $0x68] sm:$0xf]
  %v39 = vld [vmem:[%s0 + $0x6c] sm:$0xf]
  %v40 = vld [vmem:[%s0 + $0x70] sm:$0xf]
  %v41 = vld [vmem:[%s0 + $0x74] sm:$0xf]
  %v42 = vld [vmem:[%s0 + $0x78] sm:$0xf]
  %v43 = vld [vmem:[%s0 + $0x7c] sm:$0xf]
  %v44 = vld [vmem:[%s0 + $0x80] sm:$0xf]
  %v45 = vld [vmem:[%s0 + $0x84] sm:$0xf]
  %v46 = vld [vmem:[%s0 + $0x88] sm:$0xf]
  %v47 = vld [vmem:[%s0 + $0x8c] sm:$0xf]
  %v48 = vld [vmem:[%s0 + $0x90] sm:$0xf]
  %v49 = vld [vmem:[%s0 + $0x94] sm:$0xf]
  %v50 = vld [vmem:[%s0 + $0x98] sm:$0xf]
  %v51 = vld [vmem:[%s0 + $0x9c] sm:$0xf]
  %v52 = vld [vmem:[%s0 + $0xa0] sm:$0xf]
  %v53 = vld [vmem:[%s0 + $0xa4] sm:$0xf]
  %v54 = vld [vmem:[%s0 + $0xa8] sm:$0xf]
  %v55 = vld [vmem:[%s0 + $0xac] sm:$0xf]
  %v56 = vld [vmem:[%s0 + $0xb0] sm:$0xf]
  %v57 = vld [vmem:[%s0 + $0xb4] sm:$0xf]
  %v58 = vld [vmem:[%s0 + $0xb8] sm:$0xf]
  %v59 = vld [vmem:[%s0 + $0xbc] sm:$0xf]
  %v60 = vld [vmem:[%s0 + $0xc0] sm:$0xf]
  %v61 = vld [vmem:[%s0 + $0xc4] sm:$0xf]
  %v62 = vld [vmem:[%s0 + $0xc8] sm:$0xf]
  %v63 = vld [vmem:[%s0 + $0xcc] sm:$0xf]
  %v64 = vld [vmem:[%s0 + $0xd0] sm:$0xf]
  %v65 = vld [vmem:[%s0 + $0xd4] sm:$0xf]
  %v66 = vld [vmem:[%s0 + $0xd8] sm:$0xf]
  %v67 = vld [vmem:[%s0 + $0xdc] sm:$0xf]
  %v68 = vld [vmem:[%s0 + $0xe0] sm:$0xf]
  %v69 = vld [vmem:[%s0 + $0xe4] sm:$0xf]
  %v70 = vld [vmem:[%s0 + $0xe8] sm:$0xf]
  %v71 = vld [vmem:[%s0 + $0xec] sm:$0xf]
  %v72 = vld [vmem:[%s0 + $0xf0] sm:$0xf]
  %v73 = vld [vmem:[%s0 + $0xf4] sm:$0xf]
  %v74 = vld [vmem:[%s0 + $0xf8] sm:$0xf]
  %v75 = vld [vmem:[%s0 + $0xfc] sm:$0xf]
  %v76 = vld [vmem:[%s1] sm:$0xf]
  %v77 = vld [vmem:[%s1 + $0x4] sm:$0xf]
  %v78 = vld [vmem:[%s1 + $0x8] sm:$0xf]
  %v79 = vld [vmem:[%s1 + $0xc] sm:$0xf]
  %v80 = vld [vmem:[%s1 + $0x10] sm:$0x3]
  %v145 = vunpack.c.l.b16 %v12
  %v146 = vunpack.c.l.b16 %v13
  %v147 = vunpack.c.l.b16 %v14
  %v148 = vunpack.c.l.b16 %v15
  %v149 = vunpack.c.l.b16 %v16
  %v150 = vunpack.c.l.b16 %v17
  %v151 = vunpack.c.l.b16 %v18
  %v152 = vunpack.c.l.b16 %v19
  %v153 = vunpack.c.l.b16 %v20
  %v154 = vunpack.c.l.b16 %v21
  %v155 = vunpack.c.l.b16 %v22
  %v156 = vunpack.c.l.b16 %v23
  %v157 = vunpack.c.l.b16 %v24
  %v158 = vunpack.c.l.b16 %v25
  %v159 = vunpack.c.l.b16 %v26
  %v160 = vunpack.c.l.b16 %v27
  %v161 = vunpack.c.l.b16 %v28
  %v162 = vunpack.c.l.b16 %v29
  %v163 = vunpack.c.l.b16 %v30
  %v164 = vunpack.c.l.b16 %v31
  %v165 = vunpack.c.l.b16 %v32
  %v166 = vunpack.c.l.b16 %v33
  %v167 = vunpack.c.l.b16 %v34
  %v168 = vunpack.c.l.b16 %v35
  %v169 = vunpack.c.l.b16 %v36
  %v170 = vunpack.c.l.b16 %v37
  %v171 = vunpack.c.l.b16 %v38
  %v172 = vunpack.c.l.b16 %v39
  %v173 = vunpack.c.l.b16 %v40
  %v174 = vunpack.c.l.b16 %v41
  %v175 = vunpack.c.l.b16 %v42
  %v176 = vunpack.c.l.b16 %v43
  %v177 = vunpack.c.l.b16 %v44
  %v178 = vunpack.c.l.b16 %v45
  %v179 = vunpack.c.l.b16 %v46
  %v180 = vunpack.c.l.b16 %v47
  %v181 = vunpack.c.l.b16 %v48
  %v182 = vunpack.c.l.b16 %v49
  %v183 = vunpack.c.l.b16 %v50
  %v184 = vunpack.c.l.b16 %v51
  %v185 = vunpack.c.l.b16 %v52
  %v186 = vunpack.c.l.b16 %v53
  %v187 = vunpack.c.l.b16 %v54
  %v188 = vunpack.c.l.b16 %v55
  %v189 = vunpack.c.l.b16 %v56
  %v190 = vunpack.c.l.b16 %v57
  %v191 = vunpack.c.l.b16 %v58
  %v192 = vunpack.c.l.b16 %v59
  %v193 = vunpack.c.l.b16 %v60
  %v194 = vunpack.c.l.b16 %v61
  %v195 = vunpack.c.l.b16 %v62
  %v196 = vunpack.c.l.b16 %v63
  %v197 = vunpack.c.l.b16 %v64
  %v198 = vunpack.c.l.b16 %v65
  %v199 = vunpack.c.l.b16 %v66
  %v200 = vunpack.c.l.b16 %v67
  %v201 = vunpack.c.l.b16 %v68
  %v202 = vunpack.c.l.b16 %v69
  %v203 = vunpack.c.l.b16 %v70
  %v204 = vunpack.c.l.b16 %v71
  %v205 = vunpack.c.l.b16 %v72
  %v206 = vunpack.c.l.b16 %v73
  %v207 = vunpack.c.l.b16 %v74
  %v208 = vunpack.c.l.b16 %v75
  %v209 = vpack.c.b16 %v146, %v145
  %v210 = vpack.c.b16 %v148, %v147
  %v211 = vpack.c.b16 %v150, %v149
  %v212 = vpack.c.b16 %v152, %v151
  %v213 = vpack.c.b16 %v154, %v153
  %v214 = vpack.c.b16 %v156, %v155
  %v215 = vpack.c.b16 %v158, %v157
  %v216 = vpack.c.b16 %v160, %v159
  %v217 = vpack.c.b16 %v162, %v161
  %v218 = vpack.c.b16 %v164, %v163
  %v219 = vpack.c.b16 %v166, %v165
  %v220 = vpack.c.b16 %v168, %v167
  %v221 = vpack.c.b16 %v170, %v169
  %v222 = vpack.c.b16 %v172, %v171
  %v223 = vpack.c.b16 %v174, %v173
  %v224 = vpack.c.b16 %v176, %v175
  %v225 = vpack.c.b16 %v178, %v177
  %v226 = vpack.c.b16 %v180, %v179
  %v227 = vpack.c.b16 %v182, %v181
  %v228 = vpack.c.b16 %v184, %v183
  %v229 = vpack.c.b16 %v186, %v185
  %v230 = vpack.c.b16 %v188, %v187
  %v231 = vpack.c.b16 %v190, %v189
  %v232 = vpack.c.b16 %v192, %v191
  %v233 = vpack.c.b16 %v194, %v193
  %v234 = vpack.c.b16 %v196, %v195
  %v235 = vpack.c.b16 %v198, %v197
  %v236 = vpack.c.b16 %v200, %v199
  %v237 = vpack.c.b16 %v202, %v201
  %v238 = vpack.c.b16 %v204, %v203
  %v239 = vpack.c.b16 %v206, %v205
  %v240 = vpack.c.b16 %v208, %v207
  %v246 = vunpack.c.l.b16 %v76
  %v247 = vunpack.c.l.b16 %v77
  %v248 = vunpack.c.l.b16 %v78
  %v249 = vunpack.c.l.b16 %v79
  %v250 = vunpack.c.l.b16 %v80
  %v251 = vpack.c.b16 %v247, %v246
  %v252 = vpack.c.b16 %v249, %v248
  %v253 = vpack.c.b16 %v250, %v250
  %vm256 = vcmask 293888
  %v258 = vsel %vm256, %v209, 0
  %v261 = vsel %vm256, %v210, 0
  %v264 = vsel %vm256, %v211, 0
  %v267 = vsel %vm256, %v212, 0
  %v270 = vsel %vm256, %v213, 0
  %v273 = vsel %vm256, %v214, 0
  %v276 = vsel %vm256, %v215, 0
  %v279 = vsel %vm256, %v216, 0
  %v282 = vsel %vm256, %v217, 0
  %v285 = vsel %vm256, %v218, 0
  %v288 = vsel %vm256, %v219, 0
  %v291 = vsel %vm256, %v220, 0
  %v294 = vsel %vm256, %v221, 0
  %v297 = vsel %vm256, %v222, 0
  %v300 = vsel %vm256, %v223, 0
  %v303 = vsel %vm256, %v224, 0
  %v306 = vsel %vm256, %v225, 0
  %v309 = vsel %vm256, %v226, 0
  %v312 = vsel %vm256, %v227, 0
  %v315 = vsel %vm256, %v228, 0
  %v318 = vsel %vm256, %v229, 0
  %v321 = vsel %vm256, %v230, 0
  %v324 = vsel %vm256, %v231, 0
  %v327 = vsel %vm256, %v232, 0
  %v330 = vsel %vm256, %v233, 0
  %v333 = vsel %vm256, %v234, 0
  %v336 = vsel %vm256, %v235, 0
  %v339 = vsel %vm256, %v236, 0
  %v342 = vsel %vm256, %v237, 0
  %v345 = vsel %vm256, %v238, 0
  %v348 = vsel %vm256, %v239, 0
  %v351 = vsel %vm256, %v240, 0
  %vm353 = vcmask 1041408
  %v355 = vsel %vm353, %v253, 0
  %357 = vmatpush.bf16.msra.mxu0 0
  %358 = vmatpush.bf16.msra.mxu0 0
  %359 = vmatpush.bf16.msra.mxu0 0
  %360 = vmatpush.bf16.msra.mxu0 0
  %361 = vmatpush.bf16.msra.mxu0 0
  %362 = vmatpush.bf16.msra.mxu0 %v355
  %363 = vmatpush.bf16.msra.mxu0 %v252
  %364 = vmatpush.bf16.msra.mxu0 %v251
  %365 = vmatmul.bf16.gmra.mxu0 %v258
  %v366 = vpop.f32.mrf.mxu0
  %v367 = vadd.f32 0.0, %v366
  %v368 = vpop.f32.mrf.mxu0
  %v369 = vadd.f32 0.0, %v368
  %370 = vmatmul.bf16.gmra.mxu0 %v261
  %v371 = vpop.f32.mrf.mxu0
  %v372 = vadd.f32 0.0, %v371
  %v373 = vpop.f32.mrf.mxu0
  %v374 = vadd.f32 0.0, %v373
  %375 = vmatmul.bf16.gmra.mxu0 %v264
  %v376 = vpop.f32.mrf.mxu0
  %v377 = vadd.f32 0.0, %v376
  %v378 = vpop.f32.mrf.mxu0
  %v379 = vadd.f32 0.0, %v378
  %380 = vmatmul.bf16.gmra.mxu0 %v267
  %v381 = vpop.f32.mrf.mxu0
  %v382 = vadd.f32 0.0, %v381
  %v383 = vpop.f32.mrf.mxu0
  %v384 = vadd.f32 0.0, %v383
  %385 = vmatmul.bf16.gmra.mxu0 %v270
  %v386 = vpop.f32.mrf.mxu0
  %v387 = vadd.f32 0.0, %v386
  %v388 = vpop.f32.mrf.mxu0
  %v389 = vadd.f32 0.0, %v388
  %390 = vmatmul.bf16.gmra.mxu0 %v273
  %v391 = vpop.f32.mrf.mxu0
  %v392 = vadd.f32 0.0, %v391
  %v393 = vpop.f32.mrf.mxu0
  %v394 = vadd.f32 0.0, %v393
  %395 = vmatmul.bf16.gmra.mxu0 %v276
  %v396 = vpop.f32.mrf.mxu0
  %v397 = vadd.f32 0.0, %v396
  %v398 = vpop.f32.mrf.mxu0
  %v399 = vadd.f32 0.0, %v398
  %400 = vmatmul.bf16.gmra.mxu0 %v279
  %v401 = vpop.f32.mrf.mxu0
  %v402 = vadd.f32 0.0, %v401
  %v403 = vpop.f32.mrf.mxu0
  %v404 = vadd.f32 0.0, %v403
  %405 = vmatmul.bf16.gmra.mxu0 %v282
  %v406 = vpop.f32.mrf.mxu0
  %v407 = vadd.f32 0.0, %v406
  %v408 = vpop.f32.mrf.mxu0
  %v409 = vadd.f32 0.0, %v408
  %410 = vmatmul.bf16.gmra.mxu0 %v285
  %v411 = vpop.f32.mrf.mxu0
  %v412 = vadd.f32 0.0, %v411
  %v413 = vpop.f32.mrf.mxu0
  %v414 = vadd.f32 0.0, %v413
  %415 = vmatmul.bf16.gmra.mxu0 %v288
  %v416 = vpop.f32.mrf.mxu0
  %v417 = vadd.f32 0.0, %v416
  %v418 = vpop.f32.mrf.mxu0
  %v419 = vadd.f32 0.0, %v418
  %420 = vmatmul.bf16.gmra.mxu0 %v291
  %v421 = vpop.f32.mrf.mxu0
  %v422 = vadd.f32 0.0, %v421
  %v423 = vpop.f32.mrf.mxu0
  %v424 = vadd.f32 0.0, %v423
  %425 = vmatmul.bf16.gmra.mxu0 %v294
  %v426 = vpop.f32.mrf.mxu0
  %v427 = vadd.f32 0.0, %v426
  %v428 = vpop.f32.mrf.mxu0
  %v429 = vadd.f32 0.0, %v428
  %430 = vmatmul.bf16.gmra.mxu0 %v297
  %v431 = vpop.f32.mrf.mxu0
  %v432 = vadd.f32 0.0, %v431
  %v433 = vpop.f32.mrf.mxu0
  %v434 = vadd.f32 0.0, %v433
  %435 = vmatmul.bf16.gmra.mxu0 %v300
  %v436 = vpop.f32.mrf.mxu0
  %v437 = vadd.f32 0.0, %v436
  %v438 = vpop.f32.mrf.mxu0
  %v439 = vadd.f32 0.0, %v438
  %440 = vmatmul.bf16.gmra.mxu0 %v303
  %v441 = vpop.f32.mrf.mxu0
  %v442 = vadd.f32 0.0, %v441
  %v443 = vpop.f32.mrf.mxu0
  %v444 = vadd.f32 0.0, %v443
  %445 = vmatmul.bf16.gmra.mxu0 %v306
  %v446 = vpop.f32.mrf.mxu0
  %v447 = vadd.f32 0.0, %v446
  %v448 = vpop.f32.mrf.mxu0
  %v449 = vadd.f32 0.0, %v448
  %450 = vmatmul.bf16.gmra.mxu0 %v309
  %v451 = vpop.f32.mrf.mxu0
  %v452 = vadd.f32 0.0, %v451
  %v453 = vpop.f32.mrf.mxu0
  %v454 = vadd.f32 0.0, %v453
  %455 = vmatmul.bf16.gmra.mxu0 %v312
  %v456 = vpop.f32.mrf.mxu0
  %v457 = vadd.f32 0.0, %v456
  %v458 = vpop.f32.mrf.mxu0
  %v459 = vadd.f32 0.0, %v458
  %460 = vmatmul.bf16.gmra.mxu0 %v315
  %v461 = vpop.f32.mrf.mxu0
  %v462 = vadd.f32 0.0, %v461
  %v463 = vpop.f32.mrf.mxu0
  %v464 = vadd.f32 0.0, %v463
  %465 = vmatmul.bf16.gmra.mxu0 %v318
  %v466 = vpop.f32.mrf.mxu0
  %v467 = vadd.f32 0.0, %v466
  %v468 = vpop.f32.mrf.mxu0
  %v469 = vadd.f32 0.0, %v468
  %470 = vmatmul.bf16.gmra.mxu0 %v321
  %v471 = vpop.f32.mrf.mxu0
  %v472 = vadd.f32 0.0, %v471
  %v473 = vpop.f32.mrf.mxu0
  %v474 = vadd.f32 0.0, %v473
  %475 = vmatmul.bf16.gmra.mxu0 %v324
  %v476 = vpop.f32.mrf.mxu0
  %v477 = vadd.f32 0.0, %v476
  %v478 = vpop.f32.mrf.mxu0
  %v479 = vadd.f32 0.0, %v478
  %480 = vmatmul.bf16.gmra.mxu0 %v327
  %v481 = vpop.f32.mrf.mxu0
  %v482 = vadd.f32 0.0, %v481
  %v483 = vpop.f32.mrf.mxu0
  %v484 = vadd.f32 0.0, %v483
  %485 = vmatmul.bf16.gmra.mxu0 %v330
  %v486 = vpop.f32.mrf.mxu0
  %v487 = vadd.f32 0.0, %v486
  %v488 = vpop.f32.mrf.mxu0
  %v489 = vadd.f32 0.0, %v488
  %490 = vmatmul.bf16.gmra.mxu0 %v333
  %v491 = vpop.f32.mrf.mxu0
  %v492 = vadd.f32 0.0, %v491
  %v493 = vpop.f32.mrf.mxu0
  %v494 = vadd.f32 0.0, %v493
  %495 = vmatmul.bf16.gmra.mxu0 %v336
  %v496 = vpop.f32.mrf.mxu0
  %v497 = vadd.f32 0.0, %v496
  %v498 = vpop.f32.mrf.mxu0
  %v499 = vadd.f32 0.0, %v498
  %500 = vmatmul.bf16.gmra.mxu0 %v339
  %v501 = vpop.f32.mrf.mxu0
  %v502 = vadd.f32 0.0, %v501
  %v503 = vpop.f32.mrf.mxu0
  %v504 = vadd.f32 0.0, %v503
  %505 = vmatmul.bf16.gmra.mxu0 %v342
  %v506 = vpop.f32.mrf.mxu0
  %v507 = vadd.f32 0.0, %v506
  %v508 = vpop.f32.mrf.mxu0
  %v509 = vadd.f32 0.0, %v508
  %510 = vmatmul.bf16.gmra.mxu0 %v345
  %v511 = vpop.f32.mrf.mxu0
  %v512 = vadd.f32 0.0, %v511
  %v513 = vpop.f32.mrf.mxu0
  %v514 = vadd.f32 0.0, %v513
  %515 = vmatmul.bf16.gmra.mxu0 %v348
  %v516 = vpop.f32.mrf.mxu0
  %v517 = vadd.f32 0.0, %v516
  %v518 = vpop.f32.mrf.mxu0
  %v519 = vadd.f32 0.0, %v518
  %520 = vmatmul.bf16.gmra.mxu0 %v351
  %v521 = vpop.f32.mrf.mxu0
  %v522 = vadd.f32 0.0, %v521
  %v523 = vpop.f32.mrf.mxu0
  %v524 = vadd.f32 0.0, %v523
  %525 = vdwg.mxu0
  %vm526 = vcmp.ge.f32.partialorder %v367, 0.0
  %vm527 = vcmp.ge.f32.partialorder %v369, 0.0
  %vm528 = vcmp.ge.f32.partialorder %v372, 0.0
  %vm529 = vcmp.ge.f32.partialorder %v374, 0.0
  %vm530 = vcmp.ge.f32.partialorder %v377, 0.0
  %vm531 = vcmp.ge.f32.partialorder %v379, 0.0
  %vm532 = vcmp.ge.f32.partialorder %v382, 0.0
  %vm533 = vcmp.ge.f32.partialorder %v384, 0.0
  %vm534 = vcmp.ge.f32.partialorder %v387, 0.0
  %vm535 = vcmp.ge.f32.partialorder %v389, 0.0
  %vm536 = vcmp.ge.f32.partialorder %v392, 0.0
  %vm537 = vcmp.ge.f32.partialorder %v394, 0.0
  %vm538 = vcmp.ge.f32.partialorder %v397, 0.0
  %vm539 = vcmp.ge.f32.partialorder %v399, 0.0
  %vm540 = vcmp.ge.f32.partialorder %v402, 0.0
  %vm541 = vcmp.ge.f32.partialorder %v404, 0.0
  %vm542 = vcmp.ge.f32.partialorder %v407, 0.0
  %vm543 = vcmp.ge.f32.partialorder %v409, 0.0
  %vm544 = vcmp.ge.f32.partialorder %v412, 0.0
  %vm545 = vcmp.ge.f32.partialorder %v414, 0.0
  %vm546 = vcmp.ge.f32.partialorder %v417, 0.0
  %vm547 = vcmp.ge.f32.partialorder %v419, 0.0
  %vm548 = vcmp.ge.f32.partialorder %v422, 0.0
  %vm549 = vcmp.ge.f32.partialorder %v424, 0.0
  %vm550 = vcmp.ge.f32.partialorder %v427, 0.0
  %vm551 = vcmp.ge.f32.partialorder %v429, 0.0
  %vm552 = vcmp.ge.f32.partialorder %v432, 0.0
  %vm553 = vcmp.ge.f32.partialorder %v434, 0.0
  %vm554 = vcmp.ge.f32.partialorder %v437, 0.0
  %vm555 = vcmp.ge.f32.partialorder %v439, 0.0
  %vm556 = vcmp.ge.f32.partialorder %v442, 0.0
  %vm557 = vcmp.ge.f32.partialorder %v444, 0.0
  %vm558 = vcmp.ge.f32.partialorder %v447, 0.0
  %vm559 = vcmp.ge.f32.partialorder %v449, 0.0
  %vm560 = vcmp.ge.f32.partialorder %v452, 0.0
  %vm561 = vcmp.ge.f32.partialorder %v454, 0.0
  %vm562 = vcmp.ge.f32.partialorder %v457, 0.0
  %vm563 = vcmp.ge.f32.partialorder %v459, 0.0
  %vm564 = vcmp.ge.f32.partialorder %v462, 0.0
  %vm565 = vcmp.ge.f32.partialorder %v464, 0.0
  %vm566 = vcmp.ge.f32.partialorder %v467, 0.0
  %vm567 = vcmp.ge.f32.partialorder %v469, 0.0
  %vm568 = vcmp.ge.f32.partialorder %v472, 0.0
  %vm569 = vcmp.ge.f32.partialorder %v474, 0.0
  %vm570 = vcmp.ge.f32.partialorder %v477, 0.0
  %vm571 = vcmp.ge.f32.partialorder %v479, 0.0
  %vm572 = vcmp.ge.f32.partialorder %v482, 0.0
  %vm573 = vcmp.ge.f32.partialorder %v484, 0.0
  %vm574 = vcmp.ge.f32.partialorder %v487, 0.0
  %vm575 = vcmp.ge.f32.partialorder %v489, 0.0
  %vm576 = vcmp.ge.f32.partialorder %v492, 0.0
  %vm577 = vcmp.ge.f32.partialorder %v494, 0.0
  %vm578 = vcmp.ge.f32.partialorder %v497, 0.0
  %vm579 = vcmp.ge.f32.partialorder %v499, 0.0
  %vm580 = vcmp.ge.f32.partialorder %v502, 0.0
  %vm581 = vcmp.ge.f32.partialorder %v504, 0.0
  %vm582 = vcmp.ge.f32.partialorder %v507, 0.0
  %vm583 = vcmp.ge.f32.partialorder %v509, 0.0
  %vm584 = vcmp.ge.f32.partialorder %v512, 0.0
  %vm585 = vcmp.ge.f32.partialorder %v514, 0.0
  %vm586 = vcmp.ge.f32.partialorder %v517, 0.0
  %vm587 = vcmp.ge.f32.partialorder %v519, 0.0
  %vm588 = vcmp.ge.f32.partialorder %v522, 0.0
  %vm589 = vcmp.ge.f32.partialorder %v524, 0.0
  %v590 = vmul.f32 %v367, 0.2
  %v591 = vmul.f32 %v369, 0.2
  %v592 = vmul.f32 %v372, 0.2
  %v593 = vmul.f32 %v374, 0.2
  %v594 = vmul.f32 %v377, 0.2
  %v595 = vmul.f32 %v379, 0.2
  %v596 = vmul.f32 %v382, 0.2
  %v597 = vmul.f32 %v384, 0.2
  %v598 = vmul.f32 %v387, 0.2
  %v599 = vmul.f32 %v389, 0.2
  %v600 = vmul.f32 %v392, 0.2
  %v601 = vmul.f32 %v394, 0.2
  %v602 = vmul.f32 %v397, 0.2
  %v603 = vmul.f32 %v399, 0.2
  %v604 = vmul.f32 %v402, 0.2
  %v605 = vmul.f32 %v404, 0.2
  %v606 = vmul.f32 %v407, 0.2
  %v607 = vmul.f32 %v409, 0.2
  %v608 = vmul.f32 %v412, 0.2
  %v609 = vmul.f32 %v414, 0.2
  %v610 = vmul.f32 %v417, 0.2
  %v611 = vmul.f32 %v419, 0.2
  %v612 = vmul.f32 %v422, 0.2
  %v613 = vmul.f32 %v424, 0.2
  %v614 = vmul.f32 %v427, 0.2
  %v615 = vmul.f32 %v429, 0.2
  %v616 = vmul.f32 %v432, 0.2
  %v617 = vmul.f32 %v434, 0.2
  %v618 = vmul.f32 %v437, 0.2
  %v619 = vmul.f32 %v439, 0.2
  %v620 = vmul.f32 %v442, 0.2
  %v621 = vmul.f32 %v444, 0.2
  %v622 = vmul.f32 %v447, 0.2
  %v623 = vmul.f32 %v449, 0.2
  %v624 = vmul.f32 %v452, 0.2
  %v625 = vmul.f32 %v454, 0.2
  %v626 = vmul.f32 %v457, 0.2
  %v627 = vmul.f32 %v459, 0.2
  %v628 = vmul.f32 %v462, 0.2
  %v629 = vmul.f32 %v464, 0.2
  %v630 = vmul.f32 %v467, 0.2
  %v631 = vmul.f32 %v469, 0.2
  %v632 = vmul.f32 %v472, 0.2
  %v633 = vmul.f32 %v474, 0.2
  %v634 = vmul.f32 %v477, 0.2
  %v635 = vmul.f32 %v479, 0.2
  %v636 = vmul.f32 %v482, 0.2
  %v637 = vmul.f32 %v484, 0.2
  %v638 = vmul.f32 %v487, 0.2
  %v639 = vmul.f32 %v489, 0.2
  %v640 = vmul.f32 %v492, 0.2
  %v641 = vmul.f32 %v494, 0.2
  %v642 = vmul.f32 %v497, 0.2
  %v643 = vmul.f32 %v499, 0.2
  %v644 = vmul.f32 %v502, 0.2
  %v645 = vmul.f32 %v504, 0.2
  %v646 = vmul.f32 %v507, 0.2
  %v647 = vmul.f32 %v509, 0.2
  %v648 = vmul.f32 %v512, 0.2
  %v649 = vmul.f32 %v514, 0.2
  %v650 = vmul.f32 %v517, 0.2
  %v651 = vmul.f32 %v519, 0.2
  %v652 = vmul.f32 %v522, 0.2
  %v653 = vmul.f32 %v524, 0.2
  %v654 = vsel %vm526, %v367, %v590
  %v655 = vsel %vm527, %v369, %v591
  %v656 = vsel %vm528, %v372, %v592
  %v657 = vsel %vm529, %v374, %v593
  %v658 = vsel %vm530, %v377, %v594
  %v659 = vsel %vm531, %v379, %v595
  %v660 = vsel %vm532, %v382, %v596
  %v661 = vsel %vm533, %v384, %v597
  %v662 = vsel %vm534, %v387, %v598
  %v663 = vsel %vm535, %v389, %v599
  %v664 = vsel %vm536, %v392, %v600
  %v665 = vsel %vm537, %v394, %v601
  %v666 = vsel %vm538, %v397, %v602
  %v667 = vsel %vm539, %v399, %v603
  %v668 = vsel %vm540, %v402, %v604
  %v669 = vsel %vm541, %v404, %v605
  %v670 = vsel %vm542, %v407, %v606
  %v671 = vsel %vm543, %v409, %v607
  %v672 = vsel %vm544, %v412, %v608
  %v673 = vsel %vm545, %v414, %v609
  %v674 = vsel %vm546, %v417, %v610
  %v675 = vsel %vm547, %v419, %v611
  %v676 = vsel %vm548, %v422, %v612
  %v677 = vsel %vm549, %v424, %v613
  %v678 = vsel %vm550, %v427, %v614
  %v679 = vsel %vm551, %v429, %v615
  %v680 = vsel %vm552, %v432, %v616
  %v681 = vsel %vm553, %v434, %v617
  %v682 = vsel %vm554, %v437, %v618
  %v683 = vsel %vm555, %v439, %v619
  %v684 = vsel %vm556, %v442, %v620
  %v685 = vsel %vm557, %v444, %v621
  %v686 = vsel %vm558, %v447, %v622
  %v687 = vsel %vm559, %v449, %v623
  %v688 = vsel %vm560, %v452, %v624
  %v689 = vsel %vm561, %v454, %v625
  %v690 = vsel %vm562, %v457, %v626
  %v691 = vsel %vm563, %v459, %v627
  %v692 = vsel %vm564, %v462, %v628
  %v693 = vsel %vm565, %v464, %v629
  %v694 = vsel %vm566, %v467, %v630
  %v695 = vsel %vm567, %v469, %v631
  %v696 = vsel %vm568, %v472, %v632
  %v697 = vsel %vm569, %v474, %v633
  %v698 = vsel %vm570, %v477, %v634
  %v699 = vsel %vm571, %v479, %v635
  %v700 = vsel %vm572, %v482, %v636
  %v701 = vsel %vm573, %v484, %v637
  %v702 = vsel %vm574, %v487, %v638
  %v703 = vsel %vm575, %v489, %v639
  %v704 = vsel %vm576, %v492, %v640
  %v705 = vsel %vm577, %v494, %v641
  %v706 = vsel %vm578, %v497, %v642
  %v707 = vsel %vm579, %v499, %v643
  %v708 = vsel %vm580, %v502, %v644
  %v709 = vsel %vm581, %v504, %v645
  %v710 = vsel %vm582, %v507, %v646
  %v711 = vsel %vm583, %v509, %v647
  %v712 = vsel %vm584, %v512, %v648
  %v713 = vsel %vm585, %v514, %v649
  %v714 = vsel %vm586, %v517, %v650
  %v715 = vsel %vm587, %v519, %v651
  %v716 = vsel %vm588, %v522, %v652
  %v717 = vsel %vm589, %v524, %v653
  %v718 = vpack.c.bf16 %v654, %v654
  %v719 = vpack.c.bf16 %v655, %v655
  %v720 = vpack.c.bf16 %v656, %v656
  %v721 = vpack.c.bf16 %v657, %v657
  %v722 = vpack.c.bf16 %v658, %v658
  %v723 = vpack.c.bf16 %v659, %v659
  %v724 = vpack.c.bf16 %v660, %v660
  %v725 = vpack.c.bf16 %v661, %v661
  %v726 = vpack.c.bf16 %v662, %v662
  %v727 = vpack.c.bf16 %v663, %v663
  %v728 = vpack.c.bf16 %v664, %v664
  %v729 = vpack.c.bf16 %v665, %v665
  %v730 = vpack.c.bf16 %v666, %v666
  %v731 = vpack.c.bf16 %v667, %v667
  %v732 = vpack.c.bf16 %v668, %v668
  %v733 = vpack.c.bf16 %v669, %v669
  %v734 = vpack.c.bf16 %v670, %v670
  %v735 = vpack.c.bf16 %v671, %v671
  %v736 = vpack.c.bf16 %v672, %v672
  %v737 = vpack.c.bf16 %v673, %v673
  %v738 = vpack.c.bf16 %v674, %v674
  %v739 = vpack.c.bf16 %v675, %v675
  %v740 = vpack.c.bf16 %v676, %v676
  %v741 = vpack.c.bf16 %v677, %v677
  %v742 = vpack.c.bf16 %v678, %v678
  %v743 = vpack.c.bf16 %v679, %v679
  %v744 = vpack.c.bf16 %v680, %v680
  %v745 = vpack.c.bf16 %v681, %v681
  %v746 = vpack.c.bf16 %v682, %v682
  %v747 = vpack.c.bf16 %v683, %v683
  %v748 = vpack.c.bf16 %v684, %v684
  %v749 = vpack.c.bf16 %v685, %v685
  %v750 = vpack.c.bf16 %v686, %v686
  %v751 = vpack.c.bf16 %v687, %v687
  %v752 = vpack.c.bf16 %v688, %v688
  %v753 = vpack.c.bf16 %v689, %v689
  %v754 = vpack.c.bf16 %v690, %v690
  %v755 = vpack.c.bf16 %v691, %v691
  %v756 = vpack.c.bf16 %v692, %v692
  %v757 = vpack.c.bf16 %v693, %v693
  %v758 = vpack.c.bf16 %v694, %v694
  %v759 = vpack.c.bf16 %v695, %v695
  %v760 = vpack.c.bf16 %v696, %v696
  %v761 = vpack.c.bf16 %v697, %v697
  %v762 = vpack.c.bf16 %v698, %v698
  %v763 = vpack.c.bf16 %v699, %v699
  %v764 = vpack.c.bf16 %v700, %v700
  %v765 = vpack.c.bf16 %v701, %v701
  %v766 = vpack.c.bf16 %v702, %v702
  %v767 = vpack.c.bf16 %v703, %v703
  %v768 = vpack.c.bf16 %v704, %v704
  %v769 = vpack.c.bf16 %v705, %v705
  %v770 = vpack.c.bf16 %v706, %v706
  %v771 = vpack.c.bf16 %v707, %v707
  %v772 = vpack.c.bf16 %v708, %v708
  %v773 = vpack.c.bf16 %v709, %v709
  %v774 = vpack.c.bf16 %v710, %v710
  %v775 = vpack.c.bf16 %v711, %v711
  %v776 = vpack.c.bf16 %v712, %v712
  %v777 = vpack.c.bf16 %v713, %v713
  %v778 = vpack.c.bf16 %v714, %v714
  %v779 = vpack.c.bf16 %v715, %v715
  %v780 = vpack.c.bf16 %v716, %v716
  %v781 = vpack.c.bf16 %v717, %v717
  %782 = vst [vmem:[%s2] sm:$0xf] %v718
  %783 = vst [vmem:[%s2 + $0x4] sm:$0xf] %v719
  %784 = vst [vmem:[%s2 + $0x8] sm:$0xf] %v720
  %785 = vst [vmem:[%s2 + $0xc] sm:$0xf] %v721
  %786 = vst [vmem:[%s2 + $0x10] sm:$0xf] %v722
  %787 = vst [vmem:[%s2 + $0x14] sm:$0xf] %v723
  %788 = vst [vmem:[%s2 + $0x18] sm:$0xf] %v724
  %789 = vst [vmem:[%s2 + $0x1c] sm:$0xf] %v725
  %790 = vst [vmem:[%s2 + $0x20] sm:$0xf] %v726
  %791 = vst [vmem:[%s2 + $0x24] sm:$0xf] %v727
  %792 = vst [vmem:[%s2 + $0x28] sm:$0xf] %v728
  %793 = vst [vmem:[%s2 + $0x2c] sm:$0xf] %v729
  %794 = vst [vmem:[%s2 + $0x30] sm:$0xf] %v730
  %795 = vst [vmem:[%s2 + $0x34] sm:$0xf] %v731
  %796 = vst [vmem:[%s2 + $0x38] sm:$0xf] %v732
  %797 = vst [vmem:[%s2 + $0x3c] sm:$0xf] %v733
  %798 = vst [vmem:[%s2 + $0x40] sm:$0xf] %v734
  %799 = vst [vmem:[%s2 + $0x44] sm:$0xf] %v735
  %800 = vst [vmem:[%s2 + $0x48] sm:$0xf] %v736
  %801 = vst [vmem:[%s2 + $0x4c] sm:$0xf] %v737
  %802 = vst [vmem:[%s2 + $0x50] sm:$0xf] %v738
  %803 = vst [vmem:[%s2 + $0x54] sm:$0xf] %v739
  %804 = vst [vmem:[%s2 + $0x58] sm:$0xf] %v740
  %805 = vst [vmem:[%s2 + $0x5c] sm:$0xf] %v741
  %806 = vst [vmem:[%s2 + $0x60] sm:$0xf] %v742
  %807 = vst [vmem:[%s2 + $0x64] sm:$0xf] %v743
  %808 = vst [vmem:[%s2 + $0x68] sm:$0xf] %v744
  %809 = vst [vmem:[%s2 + $0x6c] sm:$0xf] %v745
  %810 = vst [vmem:[%s2 + $0x70] sm:$0xf] %v746
  %811 = vst [vmem:[%s2 + $0x74] sm:$0xf] %v747
  %812 = vst [vmem:[%s2 + $0x78] sm:$0xf] %v748
  %813 = vst [vmem:[%s2 + $0x7c] sm:$0xf] %v749
  %814 = vst [vmem:[%s2 + $0x80] sm:$0xf] %v750
  %815 = vst [vmem:[%s2 + $0x84] sm:$0xf] %v751
  %816 = vst [vmem:[%s2 + $0x88] sm:$0xf] %v752
  %817 = vst [vmem:[%s2 + $0x8c] sm:$0xf] %v753
  %818 = vst [vmem:[%s2 + $0x90] sm:$0xf] %v754
  %819 = vst [vmem:[%s2 + $0x94] sm:$0xf] %v755
  %820 = vst [vmem:[%s2 + $0x98] sm:$0xf] %v756
  %821 = vst [vmem:[%s2 + $0x9c] sm:$0xf] %v757
  %822 = vst [vmem:[%s2 + $0xa0] sm:$0xf] %v758
  %823 = vst [vmem:[%s2 + $0xa4] sm:$0xf] %v759
  %824 = vst [vmem:[%s2 + $0xa8] sm:$0xf] %v760
  %825 = vst [vmem:[%s2 + $0xac] sm:$0xf] %v761
  %826 = vst [vmem:[%s2 + $0xb0] sm:$0xf] %v762
  %827 = vst [vmem:[%s2 + $0xb4] sm:$0xf] %v763
  %828 = vst [vmem:[%s2 + $0xb8] sm:$0xf] %v764
  %829 = vst [vmem:[%s2 + $0xbc] sm:$0xf] %v765
  %830 = vst [vmem:[%s2 + $0xc0] sm:$0xf] %v766
  %831 = vst [vmem:[%s2 + $0xc4] sm:$0xf] %v767
  %832 = vst [vmem:[%s2 + $0xc8] sm:$0xf] %v768
  %833 = vst [vmem:[%s2 + $0xcc] sm:$0xf] %v769
  %834 = vst [vmem:[%s2 + $0xd0] sm:$0xf] %v770
  %835 = vst [vmem:[%s2 + $0xd4] sm:$0xf] %v771
  %836 = vst [vmem:[%s2 + $0xd8] sm:$0xf] %v772
  %837 = vst [vmem:[%s2 + $0xdc] sm:$0xf] %v773
  %838 = vst [vmem:[%s2 + $0xe0] sm:$0xf] %v774
  %839 = vst [vmem:[%s2 + $0xe4] sm:$0xf] %v775
  %840 = vst [vmem:[%s2 + $0xe8] sm:$0xf] %v776
  %841 = vst [vmem:[%s2 + $0xec] sm:$0xf] %v777
  %842 = vst [vmem:[%s2 + $0xf0] sm:$0xf] %v778
  %843 = vst [vmem:[%s2 + $0xf4] sm:$0xf] %v779
  %844 = vst [vmem:[%s2 + $0xf8] sm:$0xf] %v780
  %845 = vst [vmem:[%s2 + $0xfc] sm:$0xf] %v781
  // Predicated region
  $region10: #{discriminator_forward.9} parent=0 // pred_check
    _
  $region11: #{discriminator_forward.9} parent=0 // pred_check_branch
    %847 = sbr.rel (0) target = $region13
  $region12: #{discriminator_forward.9} parent=0 // pred_region
    _
  $region13: #{discriminator_forward.9} parent=0 // pred_fallthru
    _
  // Predicated region
  $region14: #{discriminator_forward.9} parent=0 // pred_check
    _
  $region15: #{discriminator_forward.9} parent=0 // pred_check_branch
    %849 = sbr.rel (0) target = $region17
  $region16: #{discriminator_forward.9} parent=0 // pred_region
    _
  $region17: #{discriminator_forward.9} parent=0 // pred_fallthru
    _

// kernel: discriminator_forward.12
$region0: #{discriminator_forward.12}
  #allocation0 [shape = 'u32[]', space=smem, size = 0x4, offset = 0x4, fixed_abs, tag = 'smem constant byte address 0x4 - core index']
  #allocation1 [shape = 'u32[72,128]{1,0:T(1,128)}', space=vmem, size = 0x9000, scoped, tag = 'internal scratch']
  %s0 = inlined_call_operand.vmem [shape: bf16[32,144], index: 0, kind: input, shape index: {}]
  %s1 = inlined_call_operand.vmem [shape: bf16[144,128], index: 1, kind: input, shape index: {}]
  %s2 = inlined_call_operand.vmem [shape: f32[1,128], index: 2, kind: input, shape index: {}]
  %s3 = inlined_call_operand.vmem [shape: f32[1,128], index: 3, kind: input, shape index: {}]
  %s4 = inlined_call_operand.vmem [shape: bf16[32,128], index: 4, kind: output, shape index: {}]
  %s5 = sld [smem:[#allocation0]]
  $region26: #{discriminator_forward.12} parent=0
    _
  %s7 = ssub.s32 1, %s5
  %s8 = scalar_select 0, %s7, %s5
  // Predicated region
  $region2: #{discriminator_forward.12} parent=0 // pred_check
    _
  $region3: #{discriminator_forward.12} parent=0 // pred_check_branch
    %10 = sbr.rel (0) target = $region5
  $region4: #{discriminator_forward.12} parent=0 // pred_region
    _
  $region5: #{discriminator_forward.12} parent=0 // pred_fallthru
    _
  // Predicated region
  $region6: #{discriminator_forward.12} parent=0 // pred_check
    _
  $region7: #{discriminator_forward.12} parent=0 // pred_check_branch
    %12 = sbr.rel (0) target = $region9
  $region8: #{discriminator_forward.12} parent=0 // pred_region
    _
  $region9: #{discriminator_forward.12} parent=0 // pred_fallthru
    _
  // Predicated region
  $region10: #{discriminator_forward.12} parent=0 // pred_check
    _
  $region11: #{discriminator_forward.12} parent=0 // pred_check_branch
    %14 = sbr.rel (0) target = $region13
  $region12: #{discriminator_forward.12} parent=0 // pred_region
    _
  $region13: #{discriminator_forward.12} parent=0 // pred_fallthru
    _
  // Predicated region
  $region14: #{discriminator_forward.12} parent=0 // pred_check
    _
  $region15: #{discriminator_forward.12} parent=0 // pred_check_branch
    %16 = sbr.rel (0) target = $region17
  $region16: #{discriminator_forward.12} parent=0 // pred_region
    _
  $region17: #{discriminator_forward.12} parent=0 // pred_fallthru
    _
  %v18 = vld [vmem:[%s0] sm:$0xff]
  %v19 = vld [vmem:[%s0 + $0x8] sm:$0xff]
  %v20 = vld [vmem:[%s0 + $0x10] sm:$0xff]
  %v21 = vld [vmem:[%s0 + $0x18] sm:$0xff]
  %v22 = vld [vmem:[%s1] sm:$0xf]
  %v23 = vld [vmem:[%s1 + $0x4] sm:$0xf]
  %v24 = vld [vmem:[%s1 + $0x8] sm:$0xf]
  %v25 = vld [vmem:[%s1 + $0xc] sm:$0xf]
  %v26 = vld [vmem:[%s1 + $0x10] sm:$0xf]
  %v27 = vld [vmem:[%s1 + $0x14] sm:$0xf]
  %v28 = vld [vmem:[%s1 + $0x18] sm:$0xf]
  %v29 = vld [vmem:[%s1 + $0x1c] sm:$0xf]
  %v30 = vld [vmem:[%s1 + $0x20] sm:$0xf]
  %v31 = vld [vmem:[%s1 + $0x24] sm:$0xf]
  %v32 = vld [vmem:[%s1 + $0x28] sm:$0xf]
  %v33 = vld [vmem:[%s1 + $0x2c] sm:$0xf]
  %v34 = vld [vmem:[%s1 + $0x30] sm:$0xf]
  %v35 = vld [vmem:[%s1 + $0x34] sm:$0xf]
  %v36 = vld [vmem:[%s1 + $0x38] sm:$0xf]
  %v37 = vld [vmem:[%s1 + $0x3c] sm:$0xf]
  %v38 = vld [vmem:[%s1 + $0x40] sm:$0xf]
  %v39 = vld [vmem:[%s1 + $0x44] sm:$0xf]
  %v44 = vunpack.c.l.b16 %v18
  %v45 = vunpack.c.h.b16 %v18
  %v46 = vunpack.c.l.b16 %v19
  %v47 = vunpack.c.h.b16 %v19
  %v48 = vunpack.c.l.b16 %v20
  %v49 = vunpack.c.h.b16 %v20
  %v50 = vunpack.c.l.b16 %v21
  %v51 = vunpack.c.h.b16 %v21
  %v52 = vpack.c.b16 %v46, %v44
  %v53 = vpack.c.b16 %v47, %v45
  %v54 = vpack.c.b16 %v50, %v48
  %v55 = vpack.c.b16 %v51, %v49
  %v76 = vunpack.c.l.b16 %v22
  %v77 = vunpack.c.l.b16 %v23
  %v78 = vunpack.c.l.b16 %v24
  %v79 = vunpack.c.l.b16 %v25
  %v80 = vunpack.c.l.b16 %v26
  %v81 = vunpack.c.l.b16 %v27
  %v82 = vunpack.c.l.b16 %v28
  %v83 = vunpack.c.l.b16 %v29
  %v84 = vunpack.c.l.b16 %v30
  %v85 = vunpack.c.l.b16 %v31
  %v86 = vunpack.c.l.b16 %v32
  %v87 = vunpack.c.l.b16 %v33
  %v88 = vunpack.c.l.b16 %v34
  %v89 = vunpack.c.l.b16 %v35
  %v90 = vunpack.c.l.b16 %v36
  %v91 = vunpack.c.l.b16 %v37
  %v92 = vunpack.c.l.b16 %v38
  %v93 = vunpack.c.l.b16 %v39
  %v94 = vpack.c.b16 %v77, %v76
  %v95 = vpack.c.b16 %v79, %v78
  %v96 = vpack.c.b16 %v81, %v80
  %v97 = vpack.c.b16 %v83, %v82
  %v98 = vpack.c.b16 %v85, %v84
  %v99 = vpack.c.b16 %v87, %v86
  %v100 = vpack.c.b16 %v89, %v88
  %v101 = vpack.c.b16 %v91, %v90
  %v102 = vpack.c.b16 %v93, %v92
  %vm112 = vcmask 130048
  %v114 = vsel %vm112, %v53, 0
  %v117 = vsel %vm112, %v55, 0
  %119 = vmatpush.bf16.msra.mxu0 %v101
  %120 = vmatpush.bf16.msra.mxu0 %v100
  %121 = vmatpush.bf16.msra.mxu0 %v99
  %122 = vmatpush.bf16.msra.mxu0 %v98
  %123 = vmatpush.bf16.msra.mxu0 %v97
  %124 = vmatpush.bf16.msra.mxu0 %v96
  %125 = vmatpush.bf16.msra.mxu0 %v95
  %126 = vmatpush.bf16.msra.mxu0 %v94
  %127 = vmatmul.bf16.gmra.mxu0 %v52
  %v128 = vpop.f32.mrf.mxu0
  %v129 = vadd.f32 0.0, %v128
  %v130 = vpop.f32.mrf.mxu0
  %v131 = vadd.f32 0.0, %v130
  %132 = vmatmul.bf16.gmra.mxu0 %v54
  %v133 = vpop.f32.mrf.mxu0
  %v134 = vadd.f32 0.0, %v133
  %v135 = vpop.f32.mrf.mxu0
  %v136 = vadd.f32 0.0, %v135
  %137 = vdwg.mxu0
  %138 = vmatpush.bf16.msra.mxu0 0
  %139 = vmatpush.bf16.msra.mxu0 0
  %140 = vmatpush.bf16.msra.mxu0 0
  %141 = vmatpush.bf16.msra.mxu0 0
  %142 = vmatpush.bf16.msra.mxu0 0
  %143 = vmatpush.bf16.msra.mxu0 0
  %144 = vmatpush.bf16.msra.mxu0 0
  %145 = vmatpush.bf16.msra.mxu0 %v102
  %146 = vmatmul.bf16.gmra.mxu0 %v114
  %v147 = vpop.f32.mrf.mxu0
  %v148 = vadd.f32 %v129, %v147
  %v149 = vpop.f32.mrf.mxu0
  %v150 = vadd.f32 %v131, %v149
  %151 = vmatmul.bf16.gmra.mxu0 %v117
  %v152 = vpop.f32.mrf.mxu0
  %v153 = vadd.f32 %v134, %v152
  %v154 = vpop.f32.mrf.mxu0
  %v155 = vadd.f32 %v136, %v154
  %156 = vdwg.mxu0
  %v157 = vadd.f32 %v148, %v150
  %v158 = vadd.f32 %v157, %v153
  %v159 = vadd.f32 %v158, %v155
  %v160 = vrot.slane %v159, 4
  %v161 = vadd.f32 %v159, %v160
  %v162 = vrot.slane %v161, 2
  %v163 = vadd.f32 %v161, %v162
  %v164 = vrot.slane %v163, 1
  %v165 = vadd.f32 %v163, %v164
  %v166 = vrcp.pop 32.0
  %v167 = vmul.f32 32.0, %v166
  %v168 = vsub.f32 1.0, %v167
  %v169 = vmul.f32 %v166, %v168
  %v170 = vadd.f32 %v166, %v169
  %vm171 = vweird.f32 %v166
  %v172 = vsel %vm171, %v166, %v170
  %v173 = vmul.f32 %v165, %v172
  %v174 = vsub.f32 %v148, %v173
  %v175 = vsub.f32 %v150, %v173
  %v176 = vsub.f32 %v153, %v173
  %v177 = vsub.f32 %v155, %v173
  %v178 = vmul.f32 %v174, %v174
  %v179 = vmul.f32 %v175, %v175
  %v180 = vmul.f32 %v176, %v176
  %v181 = vmul.f32 %v177, %v177
  %v182 = vadd.f32 %v178, %v179
  %v183 = vadd.f32 %v182, %v180
  %v184 = vadd.f32 %v183, %v181
  %v185 = vrot.slane %v184, 4
  %v186 = vadd.f32 %v184, %v185
  %v187 = vrot.slane %v186, 2
  %v188 = vadd.f32 %v186, %v187
  %v189 = vrot.slane %v188, 1
  %v190 = vadd.f32 %v188, %v189
  %v191 = vmul.f32 %v190, %v172
  %v192 = vadd.f32 %v191, 1e-05
  %v193 = vrsqrt.pop %v192
  %v194 = vmul.f32 %v193, %v192
  %v195 = vmul.f32 %v194, %v193
  %v196 = vmul.f32 0.5, %v195
  %v197 = vsub.f32 1.5, %v196
  %v198 = vmul.f32 %v193, %v197
  %vm199 = vweird.f32 %v192
  %vm200 = vweird.f32 %v193
  %vm201 = vmor %vm199, %vm200
  %v202 = vsel %vm201, %v193, %v198
  %v203 = vmul.f32 %v174, %v202
  %v204 = vmul.f32 %v175, %v202
  %v205 = vmul.f32 %v176, %v202
  %v206 = vmul.f32 %v177, %v202
  %v207 = vld [vmem:[%s2] sm:$0x1]
  %v209 = vperm.slane %v207, 0
  %v211 = vmul.f32 %v203, %v209
  %v212 = vmul.f32 %v204, %v209
  %v213 = vmul.f32 %v205, %v209
  %v214 = vmul.f32 %v206, %v209
  %v215 = vld [vmem:[%s3] sm:$0x1]
  %v217 = vperm.slane %v215, 0
  %v219 = vadd.f32 %v211, %v217
  %v220 = vadd.f32 %v212, %v217
  %v221 = vadd.f32 %v213, %v217
  %v222 = vadd.f32 %v214, %v217
  %vm223 = vcmp.ge.f32.partialorder %v219, 0.0
  %vm224 = vcmp.ge.f32.partialorder %v220, 0.0
  %vm225 = vcmp.ge.f32.partialorder %v221, 0.0
  %vm226 = vcmp.ge.f32.partialorder %v222, 0.0
  %v227 = vmul.f32 %v219, 0.2
  %v228 = vmul.f32 %v220, 0.2
  %v229 = vmul.f32 %v221, 0.2
  %v230 = vmul.f32 %v222, 0.2
  %v231 = vsel %vm223, %v219, %v227
  %v232 = vsel %vm224, %v220, %v228
  %v233 = vsel %vm225, %v221, %v229
  %v234 = vsel %vm226, %v222, %v230
  %v235 = vpack.c.bf16 %v231, %v231
  %v236 = vpack.c.bf16 %v232, %v232
  %v237 = vpack.c.bf16 %v233, %v233
  %v238 = vpack.c.bf16 %v234, %v234
  %239 = vst [vmem:[%s4] sm:$0xf] %v235
  %240 = vst [vmem:[%s4 + $0x4] sm:$0xf] %v236
  %241 = vst [vmem:[%s4 + $0x8] sm:$0xf] %v237
  %242 = vst [vmem:[%s4 + $0xc] sm:$0xf] %v238
  // Predicated region
  $region18: #{discriminator_forward.12} parent=0 // pred_check
    _
  $region19: #{discriminator_forward.12} parent=0 // pred_check_branch
    %244 = sbr.rel (0) target = $region21
  $region20: #{discriminator_forward.12} parent=0 // pred_region
    _
  $region21: #{discriminator_forward.12} parent=0 // pred_fallthru
    _
  // Predicated region
  $region22: #{discriminator_forward.12} parent=0 // pred_check
    _
  $region23: #{discriminator_forward.12} parent=0 // pred_check_branch
    %246 = sbr.rel (0) target = $region25
  $region24: #{discriminator_forward.12} parent=0 // pred_region
    _
  $region25: #{discriminator_forward.12} parent=0 // pred_fallthru
    _

// kernel: discriminator_forward.14
$region0: #{discriminator_forward.14}
  #allocation0 [shape = 'u32[]', space=smem, size = 0x4, offset = 0x4, fixed_abs, tag = 'smem constant byte address 0x4 - core index']
  #allocation1 [shape = 'u32[72,128]{1,0:T(1,128)}', space=vmem, size = 0x9000, scoped, tag = 'internal scratch']
  %s0 = inlined_call_operand.vmem [shape: bf16[8,288], index: 0, kind: input, shape index: {}]
  %s1 = inlined_call_operand.vmem [shape: bf16[288,128], index: 1, kind: input, shape index: {}]
  %s2 = inlined_call_operand.vmem [shape: f32[1,128], index: 2, kind: input, shape index: {}]
  %s3 = inlined_call_operand.vmem [shape: f32[1,128], index: 3, kind: input, shape index: {}]
  %s4 = inlined_call_operand.vmem [shape: bf16[8,128], index: 4, kind: output, shape index: {}]
  %s5 = sld [smem:[#allocation0]]
  $region26: #{discriminator_forward.14} parent=0
    _
  %s7 = ssub.s32 1, %s5
  %s8 = scalar_select 0, %s7, %s5
  // Predicated region
  $region2: #{discriminator_forward.14} parent=0 // pred_check
    _
  $region3: #{discriminator_forward.14} parent=0 // pred_check_branch
    %10 = sbr.rel (0) target = $region5
  $region4: #{discriminator_forward.14} parent=0 // pred_region
    _
  $region5: #{discriminator_forward.14} parent=0 // pred_fallthru
    _
  // Predicated region
  $region6: #{discriminator_forward.14} parent=0 // pred_check
    _
  $region7: #{discriminator_forward.14} parent=0 // pred_check_branch
    %12 = sbr.rel (0) target = $region9
  $region8: #{discriminator_forward.14} parent=0 // pred_region
    _
  $region9: #{discriminator_forward.14} parent=0 // pred_fallthru
    _
  // Predicated region
  $region10: #{discriminator_forward.14} parent=0 // pred_check
    _
  $region11: #{discriminator_forward.14} parent=0 // pred_check_branch
    %14 = sbr.rel (0) target = $region13
  $region12: #{discriminator_forward.14} parent=0 // pred_region
    _
  $region13: #{discriminator_forward.14} parent=0 // pred_fallthru
    _
  // Predicated region
  $region14: #{discriminator_forward.14} parent=0 // pred_check
    _
  $region15: #{discriminator_forward.14} parent=0 // pred_check_branch
    %16 = sbr.rel (0) target = $region17
  $region16: #{discriminator_forward.14} parent=0 // pred_region
    _
  $region17: #{discriminator_forward.14} parent=0 // pred_fallthru
    _
  %v18 = vld [vmem:[%s0] sm:$0xff]
  %v19 = vld [vmem:[%s0 + $0x8] sm:$0xf]
  %v20 = vld [vmem:[%s1] sm:$0xf]
  %v21 = vld [vmem:[%s1 + $0x4] sm:$0xf]
  %v22 = vld [vmem:[%s1 + $0x8] sm:$0xf]
  %v23 = vld [vmem:[%s1 + $0xc] sm:$0xf]
  %v24 = vld [vmem:[%s1 + $0x10] sm:$0xf]
  %v25 = vld [vmem:[%s1 + $0x14] sm:$0xf]
  %v26 = vld [vmem:[%s1 + $0x18] sm:$0xf]
  %v27 = vld [vmem:[%s1 + $0x1c] sm:$0xf]
  %v28 = vld [vmem:[%s1 + $0x20] sm:$0xf]
  %v29 = vld [vmem:[%s1 + $0x24] sm:$0xf]
  %v30 = vld [vmem:[%s1 + $0x28] sm:$0xf]
  %v31 = vld [vmem:[%s1 + $0x2c] sm:$0xf]
  %v32 = vld [vmem:[%s1 + $0x30] sm:$0xf]
  %v33 = vld [vmem:[%s1 + $0x34] sm:$0xf]
  %v34 = vld [vmem:[%s1 + $0x38] sm:$0xf]
  %v35 = vld [vmem:[%s1 + $0x3c] sm:$0xf]
  %v36 = vld [vmem:[%s1 + $0x40] sm:$0xf]
  %v37 = vld [vmem:[%s1 + $0x44] sm:$0xf]
  %v38 = vld [vmem:[%s1 + $0x48] sm:$0xf]
  %v39 = vld [vmem:[%s1 + $0x4c] sm:$0xf]
  %v40 = vld [vmem:[%s1 + $0x50] sm:$0xf]
  %v41 = vld [vmem:[%s1 + $0x54] sm:$0xf]
  %v42 = vld [vmem:[%s1 + $0x58] sm:$0xf]
  %v43 = vld [vmem:[%s1 + $0x5c] sm:$0xf]
  %v44 = vld [vmem:[%s1 + $0x60] sm:$0xf]
  %v45 = vld [vmem:[%s1 + $0x64] sm:$0xf]
  %v46 = vld [vmem:[%s1 + $0x68] sm:$0xf]
  %v47 = vld [vmem:[%s1 + $0x6c] sm:$0xf]
  %v48 = vld [vmem:[%s1 + $0x70] sm:$0xf]
  %v49 = vld [vmem:[%s1 + $0x74] sm:$0xf]
  %v50 = vld [vmem:[%s1 + $0x78] sm:$0xf]
  %v51 = vld [vmem:[%s1 + $0x7c] sm:$0xf]
  %v52 = vld [vmem:[%s1 + $0x80] sm:$0xf]
  %v53 = vld [vmem:[%s1 + $0x84] sm:$0xf]
  %v54 = vld [vmem:[%s1 + $0x88] sm:$0xf]
  %v55 = vld [vmem:[%s1 + $0x8c] sm:$0xf]
  %v58 = vunpack.c.l.b16 %v18
  %v59 = vunpack.c.h.b16 %v18
  %v60 = vunpack.c.l.b16 %v19
  %v61 = vpack.c.b16 %v58, %v58
  %v62 = vpack.c.b16 %v59, %v59
  %v63 = vpack.c.b16 %v60, %v60
  %v102 = vunpack.c.l.b16 %v20
  %v103 = vunpack.c.l.b16 %v21
  %v104 = vunpack.c.l.b16 %v22
  %v105 = vunpack.c.l.b16 %v23
  %v106 = vunpack.c.l.b16 %v24
  %v107 = vunpack.c.l.b16 %v25
  %v108 = vunpack.c.l.b16 %v26
  %v109 = vunpack.c.l.b16 %v27
  %v110 = vunpack.c.l.b16 %v28
  %v111 = vunpack.c.l.b16 %v29
  %v112 = vunpack.c.l.b16 %v30
  %v113 = vunpack.c.l.b16 %v31
  %v114 = vunpack.c.l.b16 %v32
  %v115 = vunpack.c.l.b16 %v33
  %v116 = vunpack.c.l.b16 %v34
  %v117 = vunpack.c.l.b16 %v35
  %v118 = vunpack.c.l.b16 %v36
  %v119 = vunpack.c.l.b16 %v37
  %v120 = vunpack.c.l.b16 %v38
  %v121 = vunpack.c.l.b16 %v39
  %v122 = vunpack.c.l.b16 %v40
  %v123 = vunpack.c.l.b16 %v41
  %v124 = vunpack.c.l.b16 %v42
  %v125 = vunpack.c.l.b16 %v43
  %v126 = vunpack.c.l.b16 %v44
  %v127 = vunpack.c.l.b16 %v45
  %v128 = vunpack.c.l.b16 %v46
  %v129 = vunpack.c.l.b16 %v47
  %v130 = vunpack.c.l.b16 %v48
  %v131 = vunpack.c.l.b16 %v49
  %v132 = vunpack.c.l.b16 %v50
  %v133 = vunpack.c.l.b16 %v51
  %v134 = vunpack.c.l.b16 %v52
  %v135 = vunpack.c.l.b16 %v53
  %v136 = vunpack.c.l.b16 %v54
  %v137 = vunpack.c.l.b16 %v55
  %v138 = vpack.c.b16 %v103, %v102
  %v139 = vpack.c.b16 %v105, %v104
  %v140 = vpack.c.b16 %v107, %v106
  %v141 = vpack.c.b16 %v109, %v108
  %v142 = vpack.c.b16 %v111, %v110
  %v143 = vpack.c.b16 %v113, %v112
  %v144 = vpack.c.b16 %v115, %v114
  %v145 = vpack.c.b16 %v117, %v116
  %v146 = vpack.c.b16 %v119, %v118
  %v147 = vpack.c.b16 %v121, %v120
  %v148 = vpack.c.b16 %v123, %v122
  %v149 = vpack.c.b16 %v125, %v124
  %v150 = vpack.c.b16 %v127, %v126
  %v151 = vpack.c.b16 %v129, %v128
  %v152 = vpack.c.b16 %v131, %v130
  %v153 = vpack.c.b16 %v133, %v132
  %v154 = vpack.c.b16 %v135, %v134
  %v155 = vpack.c.b16 %v137, %v136
  %vm174 = vcmask 261120
  %v176 = vsel %vm174, %v63, 0
  %178 = vmatpush.bf16.msra.mxu0 %v145
  %179 = vmatpush.bf16.msra.mxu0 %v144
  %180 = vmatpush.bf16.msra.mxu0 %v143
  %181 = vmatpush.bf16.msra.mxu0 %v142
  %182 = vmatpush.bf16.msra.mxu0 %v141
  %183 = vmatpush.bf16.msra.mxu0 %v140
  %184 = vmatpush.bf16.msra.mxu0 %v139
  %185 = vmatpush.bf16.msra.mxu0 %v138
  %186 = vmatmul.bf16.gmra.mxu0 %v61
  %v187 = vpop.f32.mrf.mxu0
  %v188 = vadd.f32 0.0, %v187
  %v189 = vpop.f32.mrf.mxu0
  %190 = vdwg.mxu0
  %191 = vmatpush.bf16.msra.mxu0 %v153
  %192 = vmatpush.bf16.msra.mxu0 %v152
  %193 = vmatpush.bf16.msra.mxu0 %v151
  %194 = vmatpush.bf16.msra.mxu0 %v150
  %195 = vmatpush.bf16.msra.mxu0 %v149
  %196 = vmatpush.bf16.msra.mxu0 %v148
  %197 = vmatpush.bf16.msra.mxu0 %v147
  %198 = vmatpush.bf16.msra.mxu0 %v146
  %199 = vmatmul.bf16.gmra.mxu0 %v62
  %v200 = vpop.f32.mrf.mxu0
  %v201 = vadd.f32 %v188, %v200
  %v202 = vpop.f32.mrf.mxu0
  %203 = vdwg.mxu0
  %204 = vmatpush.bf16.msra.mxu0 0
  %205 = vmatpush.bf16.msra.mxu0 0
  %206 = vmatpush.bf16.msra.mxu0 0
  %207 = vmatpush.bf16.msra.mxu0 0
  %208 = vmatpush.bf16.msra.mxu0 0
  %209 = vmatpush.bf16.msra.mxu0 0
  %210 = vmatpush.bf16.msra.mxu0 %v155
  %211 = vmatpush.bf16.msra.mxu0 %v154
  %212 = vmatmul.bf16.gmra.mxu0 %v176
  %v213 = vpop.f32.mrf.mxu0
  %v214 = vadd.f32 %v201, %v213
  %v215 = vpop.f32.mrf.mxu0
  %216 = vdwg.mxu0
  %v217 = vrot.slane %v214, 4
  %v218 = vadd.f32 %v214, %v217
  %v219 = vrot.slane %v218, 2
  %v220 = vadd.f32 %v218, %v219
  %v221 = vrot.slane %v220, 1
  %v222 = vadd.f32 %v220, %v221
  %v223 = vrcp.pop 8.0
  %v224 = vmul.f32 8.0, %v223
  %v225 = vsub.f32 1.0, %v224
  %v226 = vmul.f32 %v223, %v225
  %v227 = vadd.f32 %v223, %v226
  %vm228 = vweird.f32 %v223
  %v229 = vsel %vm228, %v223, %v227
  %v230 = vmul.f32 %v222, %v229
  %v231 = vsub.f32 %v214, %v230
  %v232 = vmul.f32 %v231, %v231
  %v233 = vrot.slane %v232, 4
  %v234 = vadd.f32 %v232, %v233
  %v235 = vrot.slane %v234, 2
  %v236 = vadd.f32 %v234, %v235
  %v237 = vrot.slane %v236, 1
  %v238 = vadd.f32 %v236, %v237
  %v239 = vmul.f32 %v238, %v229
  %v240 = vadd.f32 %v239, 1e-05
  %v241 = vrsqrt.pop %v240
  %v242 = vmul.f32 %v241, %v240
  %v243 = vmul.f32 %v242, %v241
  %v244 = vmul.f32 0.5, %v243
  %v245 = vsub.f32 1.5, %v244
  %v246 = vmul.f32 %v241, %v245
  %vm247 = vweird.f32 %v240
  %vm248 = vweird.f32 %v241
  %vm249 = vmor %vm247, %vm248
  %v250 = vsel %vm249, %v241, %v246
  %v251 = vmul.f32 %v231, %v250
  %v252 = vld [vmem:[%s2] sm:$0x1]
  %v254 = vperm.slane %v252, 0
  %v256 = vmul.f32 %v251, %v254
  %v257 = vld [vmem:[%s3] sm:$0x1]
  %v259 = vperm.slane %v257, 0
  %v261 = vadd.f32 %v256, %v259
  %vm262 = vcmp.ge.f32.partialorder %v261, 0.0
  %v263 = vmul.f32 %v261, 0.2
  %v264 = vsel %vm262, %v261, %v263
  %v265 = vpack.c.bf16 %v264, %v264
  %266 = vst [vmem:[%s4] sm:$0xf] %v265
  // Predicated region
  $region18: #{discriminator_forward.14} parent=0 // pred_check
    _
  $region19: #{discriminator_forward.14} parent=0 // pred_check_branch
    %268 = sbr.rel (0) target = $region21
  $region20: #{discriminator_forward.14} parent=0 // pred_region
    _
  $region21: #{discriminator_forward.14} parent=0 // pred_fallthru
    _
  // Predicated region
  $region22: #{discriminator_forward.14} parent=0 // pred_check
    _
  $region23: #{discriminator_forward.14} parent=0 // pred_check_branch
    %270 = sbr.rel (0) target = $region25
  $region24: #{discriminator_forward.14} parent=0 // pred_region
    _
  $region25: #{discriminator_forward.14} parent=0 // pred_fallthru
    _

// kernel: discriminator_forward.17
$region0: #{discriminator_forward.17}
  #allocation0 [shape = 'u32[]', space=smem, size = 0x4, offset = 0x4, fixed_abs, tag = 'smem constant byte address 0x4 - core index']
  #allocation1 [shape = 'u32[72,128]{1,0:T(1,128)}', space=vmem, size = 0x9000, scoped, tag = 'internal scratch']
  #allocation2 [shape = 'f32[1,1]{1,0:T(1,128)S(1)}', space=vmem, size = 0x200, scoped, tag = 'scoped memory for discriminator_forward.17']
  %s0 = inlined_call_operand.vmem [shape: bf16[2,128], index: 0, kind: input, shape index: {}]
  %s1 = inlined_call_operand.vmem [shape: bf16[128,128], index: 1, kind: input, shape index: {}]
  %s2 = inlined_call_operand.vmem [shape: f32[1,128], index: 2, kind: input, shape index: {}]
  %s3 = inlined_call_operand.vmem [shape: f32[1,128], index: 3, kind: input, shape index: {}]
  %s4 = inlined_call_operand.vmem [shape: f32[1,128], index: 4, kind: input, shape index: {}]
  %s5 = inlined_call_operand.vmem [shape: f32[128,1], index: 5, kind: input, shape index: {}]
  %s6 = inlined_call_operand.<no memory space> [shape: f32[1,1], index: 6, kind: input, shape index: {}]
  %s7 = inlined_call_operand.vmem [shape: f32[2,1], index: 7, kind: output, shape index: {}]
  %s8 = sld [smem:[#allocation0]]
  $region38: #{discriminator_forward.17} parent=0
    _
  %s10 = ssub.s32 1, %s8
  %s11 = scalar_select 0, %s10, %s8
  %v12 = vstv %s6
  %13 = vst [vmem:[#allocation2] sm:$0x1] %v12
  // Predicated region
  $region2: #{discriminator_forward.17} parent=0 // pred_check
    _
  $region3: #{discriminator_forward.17} parent=0 // pred_check_branch
    %15 = sbr.rel (0) target = $region5
  $region4: #{discriminator_forward.17} parent=0 // pred_region
    _
  $region5: #{discriminator_forward.17} parent=0 // pred_fallthru
    _
  // Predicated region
  $region6: #{discriminator_forward.17} parent=0 // pred_check
    _
  $region7: #{discriminator_forward.17} parent=0 // pred_check_branch
    %17 = sbr.rel (0) target = $region9
  $region8: #{discriminator_forward.17} parent=0 // pred_region
    _
  $region9: #{discriminator_forward.17} parent=0 // pred_fallthru
    _
  // Predicated region
  $region10: #{discriminator_forward.17} parent=0 // pred_check
    _
  $region11: #{discriminator_forward.17} parent=0 // pred_check_branch
    %19 = sbr.rel (0) target = $region13
  $region12: #{discriminator_forward.17} parent=0 // pred_region
    _
  $region13: #{discriminator_forward.17} parent=0 // pred_fallthru
    _
  // Predicated region
  $region14: #{discriminator_forward.17} parent=0 // pred_check
    _
  $region15: #{discriminator_forward.17} parent=0 // pred_check_branch
    %21 = sbr.rel (0) target = $region17
  $region16: #{discriminator_forward.17} parent=0 // pred_region
    _
  $region17: #{discriminator_forward.17} parent=0 // pred_fallthru
    _
  // Predicated region
  $region18: #{discriminator_forward.17} parent=0 // pred_check
    _
  $region19: #{discriminator_forward.17} parent=0 // pred_check_branch
    %23 = sbr.rel (0) target = $region21
  $region20: #{discriminator_forward.17} parent=0 // pred_region
    _
  $region21: #{discriminator_forward.17} parent=0 // pred_fallthru
    _
  // Predicated region
  $region22: #{discriminator_forward.17} parent=0 // pred_check
    _
  $region23: #{discriminator_forward.17} parent=0 // pred_check_branch
    %25 = sbr.rel (0) target = $region25
  $region24: #{discriminator_forward.17} parent=0 // pred_region
    _
  $region25: #{discriminator_forward.17} parent=0 // pred_fallthru
    _
  // Predicated region
  $region26: #{discriminator_forward.17} parent=0 // pred_check
    _
  $region27: #{discriminator_forward.17} parent=0 // pred_check_branch
    %27 = sbr.rel (0) target = $region29
  $region28: #{discriminator_forward.17} parent=0 // pred_region
    _
  $region29: #{discriminator_forward.17} parent=0 // pred_fallthru
    _
  %v28 = vld [vmem:[%s0] sm:$0x1]
  %v29 = vld [vmem:[%s1] sm:$0xf]
  %v30 = vld [vmem:[%s1 + $0x4] sm:$0xf]
  %v31 = vld [vmem:[%s1 + $0x8] sm:$0xf]
  %v32 = vld [vmem:[%s1 + $0xc] sm:$0xf]
  %v33 = vld [vmem:[%s1 + $0x10] sm:$0xf]
  %v34 = vld [vmem:[%s1 + $0x14] sm:$0xf]
  %v35 = vld [vmem:[%s1 + $0x18] sm:$0xf]
  %v36 = vld [vmem:[%s1 + $0x1c] sm:$0xf]
  %v37 = vld [vmem:[%s1 + $0x20] sm:$0xf]
  %v38 = vld [vmem:[%s1 + $0x24] sm:$0xf]
  %v39 = vld [vmem:[%s1 + $0x28] sm:$0xf]
  %v40 = vld [vmem:[%s1 + $0x2c] sm:$0xf]
  %v41 = vld [vmem:[%s1 + $0x30] sm:$0xf]
  %v42 = vld [vmem:[%s1 + $0x34] sm:$0xf]
  %v43 = vld [vmem:[%s1 + $0x38] sm:$0xf]
  %v44 = vld [vmem:[%s1 + $0x3c] sm:$0xf]
  %v45 = vld [vmem:[%s2] sm:$0x1]
  %v47 = vperm.slane %v45, 0
  %v65 = vunpack.c.l.b16 %v29
  %v66 = vunpack.c.l.b16 %v30
  %v67 = vunpack.c.l.b16 %v31
  %v68 = vunpack.c.l.b16 %v32
  %v69 = vunpack.c.l.b16 %v33
  %v70 = vunpack.c.l.b16 %v34
  %v71 = vunpack.c.l.b16 %v35
  %v72 = vunpack.c.l.b16 %v36
  %v73 = vunpack.c.l.b16 %v37
  %v74 = vunpack.c.l.b16 %v38
  %v75 = vunpack.c.l.b16 %v39
  %v76 = vunpack.c.l.b16 %v40
  %v77 = vunpack.c.l.b16 %v41
  %v78 = vunpack.c.l.b16 %v42
  %v79 = vunpack.c.l.b16 %v43
  %v80 = vunpack.c.l.b16 %v44
  %v81 = vpack.c.b16 %v66, %v65
  %v82 = vpack.c.b16 %v68, %v67
  %v83 = vpack.c.b16 %v70, %v69
  %v84 = vpack.c.b16 %v72, %v71
  %v85 = vpack.c.b16 %v74, %v73
  %v86 = vpack.c.b16 %v76, %v75
  %v87 = vpack.c.b16 %v78, %v77
  %v88 = vpack.c.b16 %v80, %v79
  %97 = vmatpush.bf16.msra.mxu0 %v88
  %98 = vmatpush.bf16.msra.mxu0 %v87
  %99 = vmatpush.bf16.msra.mxu0 %v86
  %100 = vmatpush.bf16.msra.mxu0 %v85
  %101 = vmatpush.bf16.msra.mxu0 %v84
  %102 = vmatpush.bf16.msra.mxu0 %v83
  %103 = vmatpush.bf16.msra.mxu0 %v82
  %104 = vmatpush.bf16.msra.mxu0 %v81
  %105 = vmatmul.bf16.gmra.mxu0 %v28
  %v106 = vpop.f32.mrf.mxu0
  %v107 = vadd.f32 %v47, %v106
  %v108 = vpop.f32.mrf.mxu0
  %109 = vdwg.mxu0
  %vm110 = vcmask 1041408
  %v111 = vsel %vm110, %v107, 0.0
  %v112 = vrot.slane %v111, 4
  %v113 = vadd.f32 %v111, %v112
  %v114 = vrot.slane %v113, 2
  %v115 = vadd.f32 %v113, %v114
  %v116 = vrot.slane %v115, 1
  %v117 = vadd.f32 %v115, %v116
  %v118 = vrcp.pop 2.0
  %v119 = vmul.f32 2.0, %v118
  %v120 = vsub.f32 1.0, %v119
  %v121 = vmul.f32 %v118, %v120
  %v122 = vadd.f32 %v118, %v121
  %vm123 = vweird.f32 %v118
  %v124 = vsel %vm123, %v118, %v122
  %v125 = vmul.f32 %v117, %v124
  %v126 = vsub.f32 %v107, %v125
  %v127 = vmul.f32 %v126, %v126
  %v128 = vsel %vm110, %v127, 0.0
  %v129 = vrot.slane %v128, 4
  %v130 = vadd.f32 %v128, %v129
  %v131 = vrot.slane %v130, 2
  %v132 = vadd.f32 %v130, %v131
  %v133 = vrot.slane %v132, 1
  %v134 = vadd.f32 %v132, %v133
  %v135 = vmul.f32 %v134, %v124
  %v136 = vadd.f32 %v135, 1e-05
  %v137 = vrsqrt.pop %v136
  %v138 = vmul.f32 %v137, %v136
  %v139 = vmul.f32 %v138, %v137
  %v140 = vmul.f32 0.5, %v139
  %v141 = vsub.f32 1.5, %v140
  %v142 = vmul.f32 %v137, %v141
  %vm143 = vweird.f32 %v136
  %vm144 = vweird.f32 %v137
  %vm145 = vmor %vm143, %vm144
  %v146 = vsel %vm145, %v137, %v142
  %v147 = vmul.f32 %v126, %v146
  %v148 = vld [vmem:[%s3] sm:$0x1]
  %v150 = vperm.slane %v148, 0
  %v152 = vmul.f32 %v147, %v150
  %v153 = vld [vmem:[%s4] sm:$0x1]
  %v155 = vperm.slane %v153, 0
  %v157 = vadd.f32 %v152, %v155
  %vm158 = vcmp.ge.f32.partialorder %v157, 0.0
  %v159 = vmul.f32 %v157, 0.2
  %v160 = vsel %vm158, %v157, %v159
  %v161 = vlaneseq
  %v162 = vshrl.u32 %v161, 7
  %v163 = vlaneseq
  %v164 = vand.u32 %v163, 127
  %vm165 = vcmp.ge.s32.totalorder %v164, %v162
  %v166 = vadd.s32 %v162, 1
  %vm167 = vcmp.lt.s32.totalorder %v164, %v166
  %vm168 = vmand %vm165, %vm167
  %v169 = vsel %vm168, 1.0, 0.0
  %vm170 = vcmask 15360
  %v172 = vsel %vm170, %v169, 0
  %v175 = vsel %vm110, %v160, 0
  %177 = vmatpush.msra.mxu0 0.0
  %178 = vmatpush.msra.mxu0 0.0
  %179 = vmatpush.msra.mxu0 0.0
  %180 = vmatpush.msra.mxu0 0.0
  %181 = vmatpush.msra.mxu0 0.0
  %182 = vmatpush.msra.mxu0 0.0
  %183 = vmatpush.msra.mxu0 0.0
  %184 = vmatpush.msra.mxu0 0.0
  %185 = vmatpush.msra.mxu0 0.0
  %186 = vmatpush.msra.mxu0 0.0
  %187 = vmatpush.msra.mxu0 0.0
  %188 = vmatpush.msra.mxu0 0.0
  %189 = vmatpush.msra.mxu0 0.0
  %190 = vmatpush.msra.mxu0 0.0
  %191 = vmatpush.msra.mxu0 0.0
  %192 = vmatpush.msra.mxu0 %v175
  %193 = vmatmul.f32.gmra.mxu0 %v172
  %v194 = vpop.f32.mrf.mxu0
  %v195 = vadd.f32 0.0, %v194
  %196 = vdwg.mxu0
  %v197 = vld [vmem:[%s5] sm:$0xff]
  %v198 = vld [vmem:[%s5 + $0x8] sm:$0xff]
  %v199 = vld [vmem:[%s5 + $0x10] sm:$0xff]
  %v200 = vld [vmem:[%s5 + $0x18] sm:$0xff]
  %v201 = vld [vmem:[%s5 + $0x20] sm:$0xff]
  %v202 = vld [vmem:[%s5 + $0x28] sm:$0xff]
  %v203 = vld [vmem:[%s5 + $0x30] sm:$0xff]
  %v204 = vld [vmem:[%s5 + $0x38] sm:$0xff]
  %v205 = vld [vmem:[%s5 + $0x40] sm:$0xff]
  %v206 = vld [vmem:[%s5 + $0x48] sm:$0xff]
  %v207 = vld [vmem:[%s5 + $0x50] sm:$0xff]
  %v208 = vld [vmem:[%s5 + $0x58] sm:$0xff]
  %v209 = vld [vmem:[%s5 + $0x60] sm:$0xff]
  %v210 = vld [vmem:[%s5 + $0x68] sm:$0xff]
  %v211 = vld [vmem:[%s5 + $0x70] sm:$0xff]
  %v212 = vld [vmem:[%s5 + $0x78] sm:$0xff]
  %v213 = vld [vmem:[#allocation2] sm:$0x1]
  %v215 = vperm.slane %v213, 0
  %217 = vmatpush.msra.mxu0 %v212
  %218 = vmatpush.msra.mxu0 %v211
  %219 = vmatpush.msra.mxu0 %v210
  %220 = vmatpush.msra.mxu0 %v209
  %221 = vmatpush.msra.mxu0 %v208
  %222 = vmatpush.msra.mxu0 %v207
  %223 = vmatpush.msra.mxu0 %v206
  %224 = vmatpush.msra.mxu0 %v205
  %225 = vmatpush.msra.mxu0 %v204
  %226 = vmatpush.msra.mxu0 %v203
  %227 = vmatpush.msra.mxu0 %v202
  %228 = vmatpush.msra.mxu0 %v201
  %229 = vmatpush.msra.mxu0 %v200
  %230 = vmatpush.msra.mxu0 %v199
  %231 = vmatpush.msra.mxu0 %v198
  %232 = vmatpush.msra.mxu0 %v197
  %233 = vmatmul.f32.gmra.mxu0 %v195
  %v234 = vpop.f32.mrf.mxu0
  %v235 = vadd.f32 %v215, %v234
  %236 = vdwg.mxu0
  %v237 = vxor.u32 %v235, 2147483648
  %v238 = vmul.f32 %v237, 1.442695
  %v239 = vpow.pop %v238
  %v240 = vadd.f32 %v239, 1.0
  %v241 = vrcp.pop %v240
  %v242 = vmul.f32 %v240, %v241
  %v243 = vsub.f32 1.0, %v242
  %v244 = vmul.f32 %v241, %v243
  %v245 = vadd.f32 %v241, %v244
  %vm246 = vweird.f32 %v240
  %vm247 = vweird.f32 %v241
  %vm248 = vmor %vm246, %vm247
  %v249 = vsel %vm248, %v241, %v245
  %v250 = vand.u32 2147483647, %v240
  %vm251 = vcmp.eq.f32.partialorder %v250, 8.507059e+37
  %v252 = vand.u32 %v240, 2147483648
  %v253 = vor.u32 1.1754944e-38, %v252
  %v254 = vsel %vm251, %v253, %v249
  %v255 = vmul.f32 1.0, %v254
  %vm256 = vcmask 1024
  %257 = vst.msk [vmem:[%s7] sm:$0x3] %vm256, %v255
  // Predicated region
  $region30: #{discriminator_forward.17} parent=0 // pred_check
    _
  $region31: #{discriminator_forward.17} parent=0 // pred_check_branch
    %259 = sbr.rel (0) target = $region33
  $region32: #{discriminator_forward.17} parent=0 // pred_region
    _
  $region33: #{discriminator_forward.17} parent=0 // pred_fallthru
    _
  // Predicated region
  $region34: #{discriminator_forward.17} parent=0 // pred_check
    _
  $region35: #{discriminator_forward.17} parent=0 // pred_check_branch
    %261 = sbr.rel (0) target = $region37
  $region36: #{discriminator_forward.17} parent=0 // pred_region
    _
  $region37: #{discriminator_forward.17} parent=0 // pred_fallthru
    _

// kernel: discriminator_forward.16
$region0: #{discriminator_forward.16}
  #allocation0 [shape = 'u32[]', space=smem, size = 0x4, offset = 0x4, fixed_abs, tag = 'smem constant byte address 0x4 - core index']
  #allocation1 [shape = 'u32[72,128]{1,0:T(1,128)}', space=vmem, size = 0x9000, scoped, tag = 'internal scratch']
  %s0 = inlined_call_operand.vmem [shape: bf16[2,576], index: 0, kind: input, shape index: {}]
  %s1 = inlined_call_operand.vmem [shape: bf16[576,128], index: 1, kind: input, shape index: {}]
  %s2 = inlined_call_operand.vmem [shape: f32[1,128], index: 2, kind: input, shape index: {}]
  %s3 = inlined_call_operand.vmem [shape: f32[1,128], index: 3, kind: input, shape index: {}]
  %s4 = inlined_call_operand.vmem [shape: bf16[2,128], index: 4, kind: output, shape index: {}]
  %s5 = sld [smem:[#allocation0]]
  $region26: #{discriminator_forward.16} parent=0
    _
  %s7 = ssub.s32 1, %s5
  %s8 = scalar_select 0, %s7, %s5
  // Predicated region
  $region2: #{discriminator_forward.16} parent=0 // pred_check
    _
  $region3: #{discriminator_forward.16} parent=0 // pred_check_branch
    %10 = sbr.rel (0) target = $region5
  $region4: #{discriminator_forward.16} parent=0 // pred_region
    _
  $region5: #{discriminator_forward.16} parent=0 // pred_fallthru
    _
  // Predicated region
  $region6: #{discriminator_forward.16} parent=0 // pred_check
    _
  $region7: #{discriminator_forward.16} parent=0 // pred_check_branch
    %12 = sbr.rel (0) target = $region9
  $region8: #{discriminator_forward.16} parent=0 // pred_region
    _
  $region9: #{discriminator_forward.16} parent=0 // pred_fallthru
    _
  // Predicated region
  $region10: #{discriminator_forward.16} parent=0 // pred_check
    _
  $region11: #{discriminator_forward.16} parent=0 // pred_check_branch
    %14 = sbr.rel (0) target = $region13
  $region12: #{discriminator_forward.16} parent=0 // pred_region
    _
  $region13: #{discriminator_forward.16} parent=0 // pred_fallthru
    _
  // Predicated region
  $region14: #{discriminator_forward.16} parent=0 // pred_check
    _
  $region15: #{discriminator_forward.16} parent=0 // pred_check_branch
    %16 = sbr.rel (0) target = $region17
  $region16: #{discriminator_forward.16} parent=0 // pred_region
    _
  $region17: #{discriminator_forward.16} parent=0 // pred_fallthru
    _
  %v18 = vld [vmem:[%s0] sm:$0x1f]
  %v19 = vld [vmem:[%s1] sm:$0xf]
  %v20 = vld [vmem:[%s1 + $0x4] sm:$0xf]
  %v21 = vld [vmem:[%s1 + $0x8] sm:$0xf]
  %v22 = vld [vmem:[%s1 + $0xc] sm:$0xf]
  %v23 = vld [vmem:[%s1 + $0x10] sm:$0xf]
  %v24 = vld [vmem:[%s1 + $0x14] sm:$0xf]
  %v25 = vld [vmem:[%s1 + $0x18] sm:$0xf]
  %v26 = vld [vmem:[%s1 + $0x1c] sm:$0xf]
  %v27 = vld [vmem:[%s1 + $0x20] sm:$0xf]
  %v28 = vld [vmem:[%s1 + $0x24] sm:$0xf]
  %v29 = vld [vmem:[%s1 + $0x28] sm:$0xf]
  %v30 = vld [vmem:[%s1 + $0x2c] sm:$0xf]
  %v31 = vld [vmem:[%s1 + $0x30] sm:$0xf]
  %v32 = vld [vmem:[%s1 + $0x34] sm:$0xf]
  %v33 = vld [vmem:[%s1 + $0x38] sm:$0xf]
  %v34 = vld [vmem:[%s1 + $0x3c] sm:$0xf]
  %v35 = vld [vmem:[%s1 + $0x40] sm:$0xf]
  %v36 = vld [vmem:[%s1 + $0x44] sm:$0xf]
  %v37 = vld [vmem:[%s1 + $0x48] sm:$0xf]
  %v38 = vld [vmem:[%s1 + $0x4c] sm:$0xf]
  %v39 = vld [vmem:[%s1 + $0x50] sm:$0xf]
  %v40 = vld [vmem:[%s1 + $0x54] sm:$0xf]
  %v41 = vld [vmem:[%s1 + $0x58] sm:$0xf]
  %v42 = vld [vmem:[%s1 + $0x5c] sm:$0xf]
  %v43 = vld [vmem:[%s1 + $0x60] sm:$0xf]
  %v44 = vld [vmem:[%s1 + $0x64] sm:$0xf]
  %v45 = vld [vmem:[%s1 + $0x68] sm:$0xf]
  %v46 = vld [vmem:[%s1 + $0x6c] sm:$0xf]
  %v47 = vld [vmem:[%s1 + $0x70] sm:$0xf]
  %v48 = vld [vmem:[%s1 + $0x74] sm:$0xf]
  %v49 = vld [vmem:[%s1 + $0x78] sm:$0xf]
  %v50 = vld [vmem:[%s1 + $0x7c] sm:$0xf]
  %v51 = vld [vmem:[%s1 + $0x80] sm:$0xf]
  %v52 = vld [vmem:[%s1 + $0x84] sm:$0xf]
  %v53 = vld [vmem:[%s1 + $0x88] sm:$0xf]
  %v54 = vld [vmem:[%s1 + $0x8c] sm:$0xf]
  %v55 = vld [vmem:[%s1 + $0x90] sm:$0xf]
  %v56 = vld [vmem:[%s1 + $0x94] sm:$0xf]
  %v57 = vld [vmem:[%s1 + $0x98] sm:$0xf]
  %v58 = vld [vmem:[%s1 + $0x9c] sm:$0xf]
  %v59 = vld [vmem:[%s1 + $0xa0] sm:$0xf]
  %v60 = vld [vmem:[%s1 + $0xa4] sm:$0xf]
  %v61 = vld [vmem:[%s1 + $0xa8] sm:$0xf]
  %v62 = vld [vmem:[%s1 + $0xac] sm:$0xf]
  %v63 = vld [vmem:[%s1 + $0xb0] sm:$0xf]
  %v64 = vld [vmem:[%s1 + $0xb4] sm:$0xf]
  %v65 = vld [vmem:[%s1 + $0xb8] sm:$0xf]
  %v66 = vld [vmem:[%s1 + $0xbc] sm:$0xf]
  %v67 = vld [vmem:[%s1 + $0xc0] sm:$0xf]
  %v68 = vld [vmem:[%s1 + $0xc4] sm:$0xf]
  %v69 = vld [vmem:[%s1 + $0xc8] sm:$0xf]
  %v70 = vld [vmem:[%s1 + $0xcc] sm:$0xf]
  %v71 = vld [vmem:[%s1 + $0xd0] sm:$0xf]
  %v72 = vld [vmem:[%s1 + $0xd4] sm:$0xf]
  %v73 = vld [vmem:[%s1 + $0xd8] sm:$0xf]
  %v74 = vld [vmem:[%s1 + $0xdc] sm:$0xf]
  %v75 = vld [vmem:[%s1 + $0xe0] sm:$0xf]
  %v76 = vld [vmem:[%s1 + $0xe4] sm:$0xf]
  %v77 = vld [vmem:[%s1 + $0xe8] sm:$0xf]
  %v78 = vld [vmem:[%s1 + $0xec] sm:$0xf]
  %v79 = vld [vmem:[%s1 + $0xf0] sm:$0xf]
  %v80 = vld [vmem:[%s1 + $0xf4] sm:$0xf]
  %v81 = vld [vmem:[%s1 + $0xf8] sm:$0xf]
  %v82 = vld [vmem:[%s1 + $0xfc] sm:$0xf]
  %v83 = vld [vmem:[%s1 + $0x100] sm:$0xf]
  %v84 = vld [vmem:[%s1 + $0x104] sm:$0xf]
  %v85 = vld [vmem:[%s1 + $0x108] sm:$0xf]
  %v86 = vld [vmem:[%s1 + $0x10c] sm:$0xf]
  %v87 = vld [vmem:[%s1 + $0x110] sm:$0xf]
  %v88 = vld [vmem:[%s1 + $0x114] sm:$0xf]
  %v89 = vld [vmem:[%s1 + $0x118] sm:$0xf]
  %v90 = vld [vmem:[%s1 + $0x11c] sm:$0xf]
  %92 = vst [vmem:[#allocation1] ss:$9 sm:$0xff] %v18
  %v93 = vld [vmem:[#allocation1] sm:$0xff]
  %v94 = vld [vmem:[#allocation1 + $0x9] sm:$0xff]
  %v95 = vld [vmem:[#allocation1 + $0x12] sm:$0xff]
  %v96 = vld [vmem:[#allocation1 + $0x1b] sm:$0xff]
  %v97 = vld [vmem:[#allocation1 + $0x24] sm:$0xff]
  %v174 = vunpack.c.l.b16 %v19
  %v175 = vunpack.c.l.b16 %v20
  %v176 = vunpack.c.l.b16 %v21
  %v177 = vunpack.c.l.b16 %v22
  %v178 = vunpack.c.l.b16 %v23
  %v179 = vunpack.c.l.b16 %v24
  %v180 = vunpack.c.l.b16 %v25
  %v181 = vunpack.c.l.b16 %v26
  %v182 = vunpack.c.l.b16 %v27
  %v183 = vunpack.c.l.b16 %v28
  %v184 = vunpack.c.l.b16 %v29
  %v185 = vunpack.c.l.b16 %v30
  %v186 = vunpack.c.l.b16 %v31
  %v187 = vunpack.c.l.b16 %v32
  %v188 = vunpack.c.l.b16 %v33
  %v189 = vunpack.c.l.b16 %v34
  %v190 = vunpack.c.l.b16 %v35
  %v191 = vunpack.c.l.b16 %v36
  %v192 = vunpack.c.l.b16 %v37
  %v193 = vunpack.c.l.b16 %v38
  %v194 = vunpack.c.l.b16 %v39
  %v195 = vunpack.c.l.b16 %v40
  %v196 = vunpack.c.l.b16 %v41
  %v197 = vunpack.c.l.b16 %v42
  %v198 = vunpack.c.l.b16 %v43
  %v199 = vunpack.c.l.b16 %v44
  %v200 = vunpack.c.l.b16 %v45
  %v201 = vunpack.c.l.b16 %v46
  %v202 = vunpack.c.l.b16 %v47
  %v203 = vunpack.c.l.b16 %v48
  %v204 = vunpack.c.l.b16 %v49
  %v205 = vunpack.c.l.b16 %v50
  %v206 = vunpack.c.l.b16 %v51
  %v207 = vunpack.c.l.b16 %v52
  %v208 = vunpack.c.l.b16 %v53
  %v209 = vunpack.c.l.b16 %v54
  %v210 = vunpack.c.l.b16 %v55
  %v211 = vunpack.c.l.b16 %v56
  %v212 = vunpack.c.l.b16 %v57
  %v213 = vunpack.c.l.b16 %v58
  %v214 = vunpack.c.l.b16 %v59
  %v215 = vunpack.c.l.b16 %v60
  %v216 = vunpack.c.l.b16 %v61
  %v217 = vunpack.c.l.b16 %v62
  %v218 = vunpack.c.l.b16 %v63
  %v219 = vunpack.c.l.b16 %v64
  %v220 = vunpack.c.l.b16 %v65
  %v221 = vunpack.c.l.b16 %v66
  %v222 = vunpack.c.l.b16 %v67
  %v223 = vunpack.c.l.b16 %v68
  %v224 = vunpack.c.l.b16 %v69
  %v225 = vunpack.c.l.b16 %v70
  %v226 = vunpack.c.l.b16 %v71
  %v227 = vunpack.c.l.b16 %v72
  %v228 = vunpack.c.l.b16 %v73
  %v229 = vunpack.c.l.b16 %v74
  %v230 = vunpack.c.l.b16 %v75
  %v231 = vunpack.c.l.b16 %v76
  %v232 = vunpack.c.l.b16 %v77
  %v233 = vunpack.c.l.b16 %v78
  %v234 = vunpack.c.l.b16 %v79
  %v235 = vunpack.c.l.b16 %v80
  %v236 = vunpack.c.l.b16 %v81
  %v237 = vunpack.c.l.b16 %v82
  %v238 = vunpack.c.l.b16 %v83
  %v239 = vunpack.c.l.b16 %v84
  %v240 = vunpack.c.l.b16 %v85
  %v241 = vunpack.c.l.b16 %v86
  %v242 = vunpack.c.l.b16 %v87
  %v243 = vunpack.c.l.b16 %v88
  %v244 = vunpack.c.l.b16 %v89
  %v245 = vunpack.c.l.b16 %v90
  %v246 = vpack.c.b16 %v175, %v174
  %v247 = vpack.c.b16 %v177, %v176
  %v248 = vpack.c.b16 %v179, %v178
  %v249 = vpack.c.b16 %v181, %v180
  %v250 = vpack.c.b16 %v183, %v182
  %v251 = vpack.c.b16 %v185, %v184
  %v252 = vpack.c.b16 %v187, %v186
  %v253 = vpack.c.b16 %v189, %v188
  %v254 = vpack.c.b16 %v191, %v190
  %v255 = vpack.c.b16 %v193, %v192
  %v256 = vpack.c.b16 %v195, %v194
  %v257 = vpack.c.b16 %v197, %v196
  %v258 = vpack.c.b16 %v199, %v198
  %v259 = vpack.c.b16 %v201, %v200
  %v260 = vpack.c.b16 %v203, %v202
  %v261 = vpack.c.b16 %v205, %v204
  %v262 = vpack.c.b16 %v207, %v206
  %v263 = vpack.c.b16 %v209, %v208
  %v264 = vpack.c.b16 %v211, %v210
  %v265 = vpack.c.b16 %v213, %v212
  %v266 = vpack.c.b16 %v215, %v214
  %v267 = vpack.c.b16 %v217, %v216
  %v268 = vpack.c.b16 %v219, %v218
  %v269 = vpack.c.b16 %v221, %v220
  %v270 = vpack.c.b16 %v223, %v222
  %v271 = vpack.c.b16 %v225, %v224
  %v272 = vpack.c.b16 %v227, %v226
  %v273 = vpack.c.b16 %v229, %v228
  %v274 = vpack.c.b16 %v231, %v230
  %v275 = vpack.c.b16 %v233, %v232
  %v276 = vpack.c.b16 %v235, %v234
  %v277 = vpack.c.b16 %v237, %v236
  %v278 = vpack.c.b16 %v239, %v238
  %v279 = vpack.c.b16 %v241, %v240
  %v280 = vpack.c.b16 %v243, %v242
  %v281 = vpack.c.b16 %v245, %v244
  %vm318 = vcmask 523264
  %v319 = vsel %vm318, %v97, 0
  %321 = vmatpush.bf16.msra.mxu0 %v253
  %322 = vmatpush.bf16.msra.mxu0 %v252
  %323 = vmatpush.bf16.msra.mxu0 %v251
  %324 = vmatpush.bf16.msra.mxu0 %v250
  %325 = vmatpush.bf16.msra.mxu0 %v249
  %326 = vmatpush.bf16.msra.mxu0 %v248
  %327 = vmatpush.bf16.msra.mxu0 %v247
  %328 = vmatpush.bf16.msra.mxu0 %v246
  %329 = vmatmul.bf16.gmra.mxu0 %v93
  %v330 = vpop.f32.mrf.mxu0
  %v331 = vadd.f32 0.0, %v330
  %v332 = vpop.f32.mrf.mxu0
  %333 = vdwg.mxu0
  %334 = vmatpush.bf16.msra.mxu0 %v261
  %335 = vmatpush.bf16.msra.mxu0 %v260
  %336 = vmatpush.bf16.msra.mxu0 %v259
  %337 = vmatpush.bf16.msra.mxu0 %v258
  %338 = vmatpush.bf16.msra.mxu0 %v257
  %339 = vmatpush.bf16.msra.mxu0 %v256
  %340 = vmatpush.bf16.msra.mxu0 %v255
  %341 = vmatpush.bf16.msra.mxu0 %v254
  %342 = vmatmul.bf16.gmra.mxu0 %v94
  %v343 = vpop.f32.mrf.mxu0
  %v344 = vadd.f32 %v331, %v343
  %v345 = vpop.f32.mrf.mxu0
  %346 = vdwg.mxu0
  %347 = vmatpush.bf16.msra.mxu0 %v269
  %348 = vmatpush.bf16.msra.mxu0 %v268
  %349 = vmatpush.bf16.msra.mxu0 %v267
  %350 = vmatpush.bf16.msra.mxu0 %v266
  %351 = vmatpush.bf16.msra.mxu0 %v265
  %352 = vmatpush.bf16.msra.mxu0 %v264
  %353 = vmatpush.bf16.msra.mxu0 %v263
  %354 = vmatpush.bf16.msra.mxu0 %v262
  %355 = vmatmul.bf16.gmra.mxu0 %v95
  %v356 = vpop.f32.mrf.mxu0
  %v357 = vadd.f32 %v344, %v356
  %v358 = vpop.f32.mrf.mxu0
  %359 = vdwg.mxu0
  %360 = vmatpush.bf16.msra.mxu0 %v277
  %361 = vmatpush.bf16.msra.mxu0 %v276
  %362 = vmatpush.bf16.msra.mxu0 %v275
  %363 = vmatpush.bf16.msra.mxu0 %v274
  %364 = vmatpush.bf16.msra.mxu0 %v273
  %365 = vmatpush.bf16.msra.mxu0 %v272
  %366 = vmatpush.bf16.msra.mxu0 %v271
  %367 = vmatpush.bf16.msra.mxu0 %v270
  %368 = vmatmul.bf16.gmra.mxu0 %v96
  %v369 = vpop.f32.mrf.mxu0
  %v370 = vadd.f32 %v357, %v369
  %v371 = vpop.f32.mrf.mxu0
  %372 = vdwg.mxu0
  %373 = vmatpush.bf16.msra.mxu0 0
  %374 = vmatpush.bf16.msra.mxu0 0
  %375 = vmatpush.bf16.msra.mxu0 0
  %376 = vmatpush.bf16.msra.mxu0 0
  %377 = vmatpush.bf16.msra.mxu0 %v281
  %378 = vmatpush.bf16.msra.mxu0 %v280
  %379 = vmatpush.bf16.msra.mxu0 %v279
  %380 = vmatpush.bf16.msra.mxu0 %v278
  %381 = vmatmul.bf16.gmra.mxu0 %v319
  %v382 = vpop.f32.mrf.mxu0
  %v383 = vadd.f32 %v370, %v382
  %v384 = vpop.f32.mrf.mxu0
  %385 = vdwg.mxu0
  %vm386 = vcmask 1041408
  %v387 = vsel %vm386, %v383, 0.0
  %v388 = vrot.slane %v387, 4
  %v389 = vadd.f32 %v387, %v388
  %v390 = vrot.slane %v389, 2
  %v391 = vadd.f32 %v389, %v390
  %v392 = vrot.slane %v391, 1
  %v393 = vadd.f32 %v391, %v392
  %v394 = vrcp.pop 2.0
  %v395 = vmul.f32 2.0, %v394
  %v396 = vsub.f32 1.0, %v395
  %v397 = vmul.f32 %v394, %v396
  %v398 = vadd.f32 %v394, %v397
  %vm399 = vweird.f32 %v394
  %v400 = vsel %vm399, %v394, %v398
  %v401 = vmul.f32 %v393, %v400
  %v402 = vsub.f32 %v383, %v401
  %v403 = vmul.f32 %v402, %v402
  %v404 = vsel %vm386, %v403, 0.0
  %v405 = vrot.slane %v404, 4
  %v406 = vadd.f32 %v404, %v405
  %v407 = vrot.slane %v406, 2
  %v408 = vadd.f32 %v406, %v407
  %v409 = vrot.slane %v408, 1
  %v410 = vadd.f32 %v408, %v409
  %v411 = vmul.f32 %v410, %v400
  %v412 = vadd.f32 %v411, 1e-05
  %v413 = vrsqrt.pop %v412
  %v414 = vmul.f32 %v413, %v412
  %v415 = vmul.f32 %v414, %v413
  %v416 = vmul.f32 0.5, %v415
  %v417 = vsub.f32 1.5, %v416
  %v418 = vmul.f32 %v413, %v417
  %vm419 = vweird.f32 %v412
  %vm420 = vweird.f32 %v413
  %vm421 = vmor %vm419, %vm420
  %v422 = vsel %vm421, %v413, %v418
  %v423 = vmul.f32 %v402, %v422
  %v424 = vld [vmem:[%s2] sm:$0x1]
  %v426 = vperm.slane %v424, 0
  %v428 = vmul.f32 %v423, %v426
  %v429 = vld [vmem:[%s3] sm:$0x1]
  %v431 = vperm.slane %v429, 0
  %v433 = vadd.f32 %v428, %v431
  %vm434 = vcmp.ge.f32.partialorder %v433, 0.0
  %v435 = vmul.f32 %v433, 0.2
  %v436 = vsel %vm434, %v433, %v435
  %v437 = vpack.c.bf16 %v436, %v436
  %438 = vst [vmem:[%s4] sm:$0x1] %v437
  // Predicated region
  $region18: #{discriminator_forward.16} parent=0 // pred_check
    _
  $region19: #{discriminator_forward.16} parent=0 // pred_check_branch
    %440 = sbr.rel (0) target = $region21
  $region20: #{discriminator_forward.16} parent=0 // pred_region
    _
  $region21: #{discriminator_forward.16} parent=0 // pred_fallthru
    _
  // Predicated region
  $region22: #{discriminator_forward.16} parent=0 // pred_check
    _
  $region23: #{discriminator_forward.16} parent=0 // pred_check_branch
    %442 = sbr.rel (0) target = $region25
  $region24: #{discriminator_forward.16} parent=0 // pred_region
    _
  $region25: #{discriminator_forward.16} parent=0 // pred_fallthru
    _

</llo_original>
